<compile_context>
chip_gen: v7x
topology: tpu7x:2x2x1
jax: 0.10.0
libtpu: 0.0.40
codegen_flags: <defaults>
</compile_context>

<pallas_src>
import jax
import jax.numpy as jnp
from jax import lax
from jax.experimental import pallas as pl
from jax.experimental.pallas import tpu as pltpu


# ---------------------------------------------------------------------------
# Kernel
# ---------------------------------------------------------------------------
def _make_basic_block_kernel(B, H, W, C):
    WC = W * C
    M = B * H  # packed rows per grid step

    def kernel(x_ref, w1_ref, w2_ref, bias_ref, out_ref, patch_ref):
        x = x_ref[...]                                       # (M, WC) f32

        # Per-image row-boundary validity masks (packing several images into
        # one block means block edges are no longer the only image edges).
        r = lax.broadcasted_iota(jnp.int32, (M, 1), 0)
        up_ok = (r % H) != 0            # a row above exists in the same image
        dn_ok = (r % H) != (H - 1)      # a row below exists in the same image

        def build_patch(a):
            """Write the 9 shifted taps of `a` (f32, (M, WC)) into patch_ref
            (bf16, (M, 9*WC)) as lane-aligned 128-wide slabs.
            Tap order: oy-major (-1,0,+1), ox-minor (-1,0,+1) — matches the
            block-diagonal weight layout built in the wrapper."""
            zero_r = jnp.zeros((1, WC), a.dtype)
            up = jnp.where(up_ok,
                           jnp.concatenate([zero_r, a[:M - 1, :]], axis=0),
                           0.0)
            dn = jnp.where(dn_ok,
                           jnp.concatenate([a[1:, :], zero_r], axis=0),
                           0.0)
            k = 0
            zero_c = jnp.zeros((M, C), a.dtype)
            for row_tap in (up, a, dn):                      # oy = -1, 0, +1
                left = jnp.concatenate([zero_c, row_tap[:, :WC - C]], axis=1)
                right = jnp.concatenate([row_tap[:, C:], zero_c], axis=1)
                for tap in (left, row_tap, right):           # ox = -1, 0, +1
                    patch_ref[:, k * WC:(k + 1) * WC] = tap.astype(
                        patch_ref.dtype)
                    k += 1

        # ---- conv1 (BN1 scale folded into weights) + bias + ReLU ----------
        build_patch(x)
        y1 = jnp.dot(patch_ref[...], w1_ref[...],
                     preferred_element_type=jnp.float32)
        y1 = jnp.maximum(y1 + bias_ref[0:1, :], 0.0)

        # ---- conv2 (BN2 scale folded into weights) + bias ------------------
        build_patch(y1)
        y2 = jnp.dot(patch_ref[...], w2_ref[...],
                     preferred_element_type=jnp.float32)
        y2 = y2 + bias_ref[1:2, :]

        # ---- residual add (f32) + ReLU, lane-dense store -------------------
        out_ref[...] = jnp.maximum(y2 + x, 0.0).astype(out_ref.dtype)

    return kernel


# ---------------------------------------------------------------------------
# Wrapper
# ---------------------------------------------------------------------------
def _block_diag_conv_weights(w_hwio, W, scale):
    """(3,3,Ci,Co) HWIO -> lane-stacked block-diagonal (9*W*Ci, W*Co), bf16,
    with the per-output-channel BN scale folded in."""
    kh, kw, cin, cout = w_hwio.shape
    taps = w_hwio.reshape(kh * kw, cin, cout).astype(jnp.float32)
    taps = taps * scale.reshape(1, 1, cout).astype(jnp.float32)
    eye = jnp.eye(W, dtype=jnp.float32)
    bd = jnp.einsum('uv,kio->kuivo', eye, taps)              # (9, W, Ci, W, Co)
    return bd.reshape(kh * kw * W * cin, W * cout).astype(jnp.bfloat16)


def basic_block_pallas(x_nhwc, w1, s1, b1, w2, s2, b2, imgs_per_block=None):
    N, H, W, C = x_nhwc.shape
    WC = W * C
    if imgs_per_block is None:
        imgs_per_block = N          # tiny batch: pack everything in one step
    assert N % imgs_per_block == 0
    B = imgs_per_block
    M_blk = B * H

    # Lane-dense 2-D view of activations: (N*H, W*C).
    x2d = x_nhwc.reshape(N * H, WC)

    # One-time weight / BN prep (plain JAX, outside the kernel).
    bd1 = _block_diag_conv_weights(w1, W, s1)
    bd2 = _block_diag_conv_weights(w2, W, s2)
    bias = jnp.stack([jnp.tile(b1.astype(jnp.float32), W),
                      jnp.tile(b2.astype(jnp.float32), W)], axis=0)  # (2, WC)

    kernel = _make_basic_block_kernel(B, H, W, C)

    out2d = pl.pallas_call(
        kernel,
        out_shape=jax.ShapeDtypeStruct((N * H, WC), x_nhwc.dtype),
        grid_spec=pltpu.PrefetchScalarGridSpec(
            num_scalar_prefetch=0,
            grid=(N // B,),
            in_specs=[
                pl.BlockSpec((M_blk, WC), lambda n: (n, 0)),      # packed images
                pl.BlockSpec((9 * WC, WC), lambda n: (0, 0)),     # conv1 weights (bf16)
                pl.BlockSpec((9 * WC, WC), lambda n: (0, 0)),     # conv2 weights (bf16)
                pl.BlockSpec((2, WC), lambda n: (0, 0)),          # bn1/bn2 biases
            ],
            out_specs=pl.BlockSpec((M_blk, WC), lambda n: (n, 0)),
            scratch_shapes=[pltpu.VMEM((M_blk, 9 * WC), jnp.bfloat16)],
        ),
        compiler_params=pltpu.CompilerParams(
            dimension_semantics=("parallel",)),
    )(x2d, bd1, bd2, bias)

    return out2d.reshape(N, H, W, C)


# ---------------------------------------------------------------------------
# Reference (emulates the kernel's bf16 matmul operands) and BN fusion
# ---------------------------------------------------------------------------
def basic_block_reference_bf16(x_nhwc, w1, s1, b1, w2, s2, b2):
    dn = ('NHWC', 'HWIO', 'NHWC')
    q = lambda a: a.astype(jnp.bfloat16).astype(jnp.float32)
    w1f = q(w1 * s1.reshape(1, 1, 1, -1))
    w2f = q(w2 * s2.reshape(1, 1, 1, -1))
    y = lax.conv_general_dilated(q(x_nhwc), w1f, (1, 1), 'SAME',
                                 dimension_numbers=dn,
                                 precision=lax.Precision.HIGHEST)
    y = jnp.maximum(y + b1.reshape(1, 1, 1, -1), 0.0)
    y = lax.conv_general_dilated(q(y), w2f, (1, 1), 'SAME',
                                 dimension_numbers=dn,
                                 precision=lax.Precision.HIGHEST)
    y = y + b2.reshape(1, 1, 1, -1)
    return jnp.maximum(y + x_nhwc, 0.0)


def fuse_bn(gamma, beta, mean, var, eps=1e-5):
    scale = gamma * lax.rsqrt(var + eps)
    bias = beta - mean * scale
    return scale, bias


if __name__ == "__main__":
    # PyTorch-facing shapes: x is NCHW (2, 8, 16, 16); inplanes == planes == 8,
    # stride=1, dilation=1, downsample=None.  W*C = 128 -> fully lane-dense.
    N, C, H, W = 2, 8, 16, 16
    key = jax.random.PRNGKey(0)
    keys = jax.random.split(key, 11)

    x_nchw = jax.random.normal(keys[0], (N, C, H, W), jnp.float32)

    # conv weights (HWIO), deterministic init
    w1 = jax.random.normal(keys[1], (3, 3, C, C), jnp.float32) * 0.1
    w2 = jax.random.normal(keys[2], (3, 3, C, C), jnp.float32) * 0.1

    # BatchNorm parameters + running stats (inference mode), deterministic
    g1 = 0.5 + jax.random.uniform(keys[3], (C,), jnp.float32)
    be1 = jax.random.normal(keys[4], (C,), jnp.float32) * 0.1
    m1 = jax.random.normal(keys[5], (C,), jnp.float32) * 0.1
    v1 = 0.5 + jax.random.uniform(keys[6], (C,), jnp.float32)
    g2 = 0.5 + jax.random.uniform(keys[7], (C,), jnp.float32)
    be2 = jax.random.normal(keys[8], (C,), jnp.float32) * 0.1
    m2 = jax.random.normal(keys[9], (C,), jnp.float32) * 0.1
    v2 = 0.5 + jax.random.uniform(keys[10], (C,), jnp.float32)

    s1, b1 = fuse_bn(g1, be1, m1, v1)
    s2, b2 = fuse_bn(g2, be2, m2, v2)

    # NCHW -> NHWC at the module boundary
    x_nhwc = jnp.transpose(x_nchw, (0, 2, 3, 1))

    out = basic_block_pallas(x_nhwc, w1, s1, b1, w2, s2, b2)
    out = jax.block_until_ready(out)

    ref = basic_block_reference_bf16(x_nhwc, w1, s1, b1, w2, s2, b2)
    ref = jax.block_until_ready(ref)

    assert out.shape == (N, H, W, C)
    max_err = float(jnp.max(jnp.abs(out - ref)))
    assert jnp.allclose(out, ref, atol=2e-2, rtol=2e-2), max_err

    print("KERNEL_OK")
</pallas_src>

<mosaic_0001>
module attributes {stable_mosaic.version = 11 : i64} {
  func.func @kernel(%arg0: i32, %arg1: memref<32x128xf32, #tpu.memory_space<vmem>>, %arg2: memref<1152x128xbf16, #tpu.memory_space<vmem>>, %arg3: memref<1152x128xbf16, #tpu.memory_space<vmem>>, %arg4: memref<2x128xf32, #tpu.memory_space<vmem>>, %arg5: memref<32x128xf32, #tpu.memory_space<vmem>>, %arg6: memref<32x1152xbf16, #tpu.memory_space<vmem>>) attributes {dimension_semantics = [#tpu.dimension_semantics<parallel>], iteration_bounds = array<i64: 1>, scalar_prefetch = 0 : i64, scratch_operands = 1 : i64, tpu.core_type = #tpu.core_type<tc>, window_params = [{transform_indices = @transform_0, window_bounds = array<i64: 32, 128>}, {pipeline_mode = #tpu.pipeline_mode<synchronous>, transform_indices = @transform_1, window_bounds = array<i64: 1152, 128>}, {pipeline_mode = #tpu.pipeline_mode<synchronous>, transform_indices = @transform_2, window_bounds = array<i64: 1152, 128>}, {pipeline_mode = #tpu.pipeline_mode<synchronous>, transform_indices = @transform_3, window_bounds = array<i64: 2, 128>}, {transform_indices = @transform_4, window_bounds = array<i64: 32, 128>}]} {
    %c0 = arith.constant 0 : index
    %c0_0 = arith.constant 0 : index
    %0 = vector.load %arg1[%c0, %c0_0] : memref<32x128xf32, #tpu.memory_space<vmem>>, vector<32x128xf32>
    %1 = tpu.iota {dimensions = array<i32: 0>} : vector<32x1xi32>
    %c16_i32 = arith.constant 16 : i32
    %c0_i32 = arith.constant 0 : i32
    %2 = arith.cmpi eq, %c16_i32, %c0_i32 : i32
    %c1_i32 = arith.constant 1 : i32
    %3 = arith.select %2, %c1_i32, %c16_i32 : i32
    %4 = vector.broadcast %3 : i32 to vector<32x1xi32>
    %5 = arith.remsi %1, %4 : vector<32x1xi32>
    %c0_i32_1 = arith.constant 0 : i32
    %6 = vector.broadcast %c0_i32_1 : i32 to vector<32x1xi32>
    %7 = arith.cmpi ne, %5, %6 : vector<32x1xi32>
    %c0_i32_2 = arith.constant 0 : i32
    %8 = vector.broadcast %c0_i32_2 : i32 to vector<32x1xi32>
    %9 = arith.cmpi slt, %5, %8 : vector<32x1xi32>
    %c0_i32_3 = arith.constant 0 : i32
    %10 = arith.cmpi slt, %3, %c0_i32_3 : i32
    %11 = vector.broadcast %10 : i1 to vector<32x1xi1>
    %12 = vector.broadcast %11 : vector<32x1xi1> to vector<32x1xi1>
    %13 = arith.xori %9, %12 : vector<32x1xi1>
    %14 = arith.andi %13, %7 : vector<32x1xi1>
    %15 = vector.broadcast %3 : i32 to vector<32x1xi32>
    %16 = arith.addi %5, %15 : vector<32x1xi32>
    %17 = arith.select %14, %16, %5 : vector<32x1xi1>, vector<32x1xi32>
    %c0_i32_4 = arith.constant 0 : i32
    %18 = vector.broadcast %c0_i32_4 : i32 to vector<32x1xi32>
    %19 = arith.cmpi ne, %17, %18 : vector<32x1xi32>
    %c16_i32_5 = arith.constant 16 : i32
    %c0_i32_6 = arith.constant 0 : i32
    %20 = arith.cmpi eq, %c16_i32_5, %c0_i32_6 : i32
    %c1_i32_7 = arith.constant 1 : i32
    %21 = arith.select %20, %c1_i32_7, %c16_i32_5 : i32
    %22 = vector.broadcast %21 : i32 to vector<32x1xi32>
    %23 = arith.remsi %1, %22 : vector<32x1xi32>
    %c0_i32_8 = arith.constant 0 : i32
    %24 = vector.broadcast %c0_i32_8 : i32 to vector<32x1xi32>
    %25 = arith.cmpi ne, %23, %24 : vector<32x1xi32>
    %c0_i32_9 = arith.constant 0 : i32
    %26 = vector.broadcast %c0_i32_9 : i32 to vector<32x1xi32>
    %27 = arith.cmpi slt, %23, %26 : vector<32x1xi32>
    %c0_i32_10 = arith.constant 0 : i32
    %28 = arith.cmpi slt, %21, %c0_i32_10 : i32
    %29 = vector.broadcast %28 : i1 to vector<32x1xi1>
    %30 = vector.broadcast %29 : vector<32x1xi1> to vector<32x1xi1>
    %31 = arith.xori %27, %30 : vector<32x1xi1>
    %32 = arith.andi %31, %25 : vector<32x1xi1>
    %33 = vector.broadcast %21 : i32 to vector<32x1xi32>
    %34 = arith.addi %23, %33 : vector<32x1xi32>
    %35 = arith.select %32, %34, %23 : vector<32x1xi1>, vector<32x1xi32>
    %c15_i32 = arith.constant 15 : i32
    %36 = vector.broadcast %c15_i32 : i32 to vector<32x1xi32>
    %37 = arith.cmpi ne, %35, %36 : vector<32x1xi32>
    %cst = arith.constant 0.000000e+00 : f32
    %38 = vector.broadcast %cst : f32 to vector<1x128xf32>
    %39 = vector.extract_strided_slice %0 {offsets = [0, 0], sizes = [31, 128], strides = [1, 1]} : vector<32x128xf32> to vector<31x128xf32>
    %40 = tpu.concatenate %38, %39 in 0 : vector<1x128xf32>, vector<31x128xf32> -> vector<32x128xf32>
    %cst_11 = arith.constant 0.000000e+00 : f32
    %41 = vector.shape_cast %19 : vector<32x1xi1> to vector<32x1xi1>
    %42 = vector.broadcast %41 : vector<32x1xi1> to vector<32x128xi1>
    %43 = vector.broadcast %cst_11 : f32 to vector<32x128xf32>
    %44 = arith.select %42, %40, %43 : vector<32x128xi1>, vector<32x128xf32>
    %45 = vector.extract_strided_slice %0 {offsets = [1, 0], sizes = [31, 128], strides = [1, 1]} : vector<32x128xf32> to vector<31x128xf32>
    %46 = tpu.concatenate %45, %38 in 0 : vector<31x128xf32>, vector<1x128xf32> -> vector<32x128xf32>
    %cst_12 = arith.constant 0.000000e+00 : f32
    %47 = vector.shape_cast %37 : vector<32x1xi1> to vector<32x1xi1>
    %48 = vector.broadcast %47 : vector<32x1xi1> to vector<32x128xi1>
    %49 = vector.broadcast %cst_12 : f32 to vector<32x128xf32>
    %50 = arith.select %48, %46, %49 : vector<32x128xi1>, vector<32x128xf32>
    %cst_13 = arith.constant 0.000000e+00 : f32
    %51 = vector.broadcast %cst_13 : f32 to vector<32x8xf32>
    %52 = vector.extract_strided_slice %44 {offsets = [0, 0], sizes = [32, 120], strides = [1, 1]} : vector<32x128xf32> to vector<32x120xf32>
    %53 = tpu.concatenate %51, %52 in 1 : vector<32x8xf32>, vector<32x120xf32> -> vector<32x128xf32>
    %54 = vector.extract_strided_slice %44 {offsets = [0, 8], sizes = [32, 120], strides = [1, 1]} : vector<32x128xf32> to vector<32x120xf32>
    %55 = tpu.concatenate %54, %51 in 1 : vector<32x120xf32>, vector<32x8xf32> -> vector<32x128xf32>
    %56 = arith.truncf %53 : vector<32x128xf32> to vector<32x128xbf16>
    %c0_14 = arith.constant 0 : index
    %c0_15 = arith.constant 0 : index
    %57 = vector.load %arg6[%c0_14, %c0_15] : memref<32x1152xbf16, #tpu.memory_space<vmem>>, vector<32x128xbf16>
    tpu.vector_store %arg6[%c0_14, %c0_15], %56 {strides = array<i32>} : memref<32x1152xbf16, #tpu.memory_space<vmem>>, vector<32x128xbf16>,
    %58 = arith.truncf %44 : vector<32x128xf32> to vector<32x128xbf16>
    %c0_16 = arith.constant 0 : index
    %c128 = arith.constant 128 : index
    %59 = vector.load %arg6[%c0_16, %c128] : memref<32x1152xbf16, #tpu.memory_space<vmem>>, vector<32x128xbf16>
    tpu.vector_store %arg6[%c0_16, %c128], %58 {strides = array<i32>} : memref<32x1152xbf16, #tpu.memory_space<vmem>>, vector<32x128xbf16>,
    %60 = arith.truncf %55 : vector<32x128xf32> to vector<32x128xbf16>
    %c0_17 = arith.constant 0 : index
    %c256 = arith.constant 256 : index
    %61 = vector.load %arg6[%c0_17, %c256] : memref<32x1152xbf16, #tpu.memory_space<vmem>>, vector<32x128xbf16>
    tpu.vector_store %arg6[%c0_17, %c256], %60 {strides = array<i32>} : memref<32x1152xbf16, #tpu.memory_space<vmem>>, vector<32x128xbf16>,
    %62 = vector.extract_strided_slice %0 {offsets = [0, 0], sizes = [32, 120], strides = [1, 1]} : vector<32x128xf32> to vector<32x120xf32>
    %63 = tpu.concatenate %51, %62 in 1 : vector<32x8xf32>, vector<32x120xf32> -> vector<32x128xf32>
    %64 = vector.extract_strided_slice %0 {offsets = [0, 8], sizes = [32, 120], strides = [1, 1]} : vector<32x128xf32> to vector<32x120xf32>
    %65 = tpu.concatenate %64, %51 in 1 : vector<32x120xf32>, vector<32x8xf32> -> vector<32x128xf32>
    %66 = arith.truncf %63 : vector<32x128xf32> to vector<32x128xbf16>
    %c0_18 = arith.constant 0 : index
    %c384 = arith.constant 384 : index
    %67 = vector.load %arg6[%c0_18, %c384] : memref<32x1152xbf16, #tpu.memory_space<vmem>>, vector<32x128xbf16>
    tpu.vector_store %arg6[%c0_18, %c384], %66 {strides = array<i32>} : memref<32x1152xbf16, #tpu.memory_space<vmem>>, vector<32x128xbf16>,
    %68 = arith.truncf %0 : vector<32x128xf32> to vector<32x128xbf16>
    %c0_19 = arith.constant 0 : index
    %c512 = arith.constant 512 : index
    %69 = vector.load %arg6[%c0_19, %c512] : memref<32x1152xbf16, #tpu.memory_space<vmem>>, vector<32x128xbf16>
    tpu.vector_store %arg6[%c0_19, %c512], %68 {strides = array<i32>} : memref<32x1152xbf16, #tpu.memory_space<vmem>>, vector<32x128xbf16>,
    %70 = arith.truncf %65 : vector<32x128xf32> to vector<32x128xbf16>
    %c0_20 = arith.constant 0 : index
    %c640 = arith.constant 640 : index
    %71 = vector.load %arg6[%c0_20, %c640] : memref<32x1152xbf16, #tpu.memory_space<vmem>>, vector<32x128xbf16>
    tpu.vector_store %arg6[%c0_20, %c640], %70 {strides = array<i32>} : memref<32x1152xbf16, #tpu.memory_space<vmem>>, vector<32x128xbf16>,
    %72 = vector.extract_strided_slice %50 {offsets = [0, 0], sizes = [32, 120], strides = [1, 1]} : vector<32x128xf32> to vector<32x120xf32>
    %73 = tpu.concatenate %51, %72 in 1 : vector<32x8xf32>, vector<32x120xf32> -> vector<32x128xf32>
    %74 = vector.extract_strided_slice %50 {offsets = [0, 8], sizes = [32, 120], strides = [1, 1]} : vector<32x128xf32> to vector<32x120xf32>
    %75 = tpu.concatenate %74, %51 in 1 : vector<32x120xf32>, vector<32x8xf32> -> vector<32x128xf32>
    %76 = arith.truncf %73 : vector<32x128xf32> to vector<32x128xbf16>
    %c0_21 = arith.constant 0 : index
    %c768 = arith.constant 768 : index
    %77 = vector.load %arg6[%c0_21, %c768] : memref<32x1152xbf16, #tpu.memory_space<vmem>>, vector<32x128xbf16>
    tpu.vector_store %arg6[%c0_21, %c768], %76 {strides = array<i32>} : memref<32x1152xbf16, #tpu.memory_space<vmem>>, vector<32x128xbf16>,
    %78 = arith.truncf %50 : vector<32x128xf32> to vector<32x128xbf16>
    %c0_22 = arith.constant 0 : index
    %c896 = arith.constant 896 : index
    %79 = vector.load %arg6[%c0_22, %c896] : memref<32x1152xbf16, #tpu.memory_space<vmem>>, vector<32x128xbf16>
    tpu.vector_store %arg6[%c0_22, %c896], %78 {strides = array<i32>} : memref<32x1152xbf16, #tpu.memory_space<vmem>>, vector<32x128xbf16>,
    %80 = arith.truncf %75 : vector<32x128xf32> to vector<32x128xbf16>
    %c0_23 = arith.constant 0 : index
    %c1024 = arith.constant 1024 : index
    %81 = vector.load %arg6[%c0_23, %c1024] : memref<32x1152xbf16, #tpu.memory_space<vmem>>, vector<32x128xbf16>
    tpu.vector_store %arg6[%c0_23, %c1024], %80 {strides = array<i32>} : memref<32x1152xbf16, #tpu.memory_space<vmem>>, vector<32x128xbf16>,
    %c0_24 = arith.constant 0 : index
    %c0_25 = arith.constant 0 : index
    %82 = vector.load %arg6[%c0_24, %c0_25] : memref<32x1152xbf16, #tpu.memory_space<vmem>>, vector<32x1152xbf16>
    %c0_26 = arith.constant 0 : index
    %c0_27 = arith.constant 0 : index
    %83 = vector.load %arg2[%c0_26, %c0_27] : memref<1152x128xbf16, #tpu.memory_space<vmem>>, vector<1152x128xbf16>
    %cst_28 = arith.constant dense<0.000000e+00> : vector<32x128xf32>
    %84 = tpu.matmul %82, %83, %cst_28 {dimension_numbers = #tpu.dot_dimension_numbers<[1], [0], [0], [1], [0, 0, 1, 1], [], []>} : vector<32x1152xbf16>, vector<1152x128xbf16>, vector<32x128xf32> -> vector<32x128xf32>
    %c0_29 = arith.constant 0 : index
    %c0_30 = arith.constant 0 : index
    %85 = vector.load %arg4[%c0_29, %c0_30] : memref<2x128xf32, #tpu.memory_space<vmem>>, vector<1x128xf32>
    %86 = vector.broadcast %85 : vector<1x128xf32> to vector<32x128xf32>
    %87 = arith.addf %84, %86 : vector<32x128xf32>
    %cst_31 = arith.constant 0.000000e+00 : f32
    %88 = vector.broadcast %cst_31 : f32 to vector<32x128xf32>
    %89 = arith.maximumf %87, %88 : vector<32x128xf32>
    %cst_32 = arith.constant 0.000000e+00 : f32
    %90 = vector.broadcast %cst_32 : f32 to vector<1x128xf32>
    %91 = vector.extract_strided_slice %89 {offsets = [0, 0], sizes = [31, 128], strides = [1, 1]} : vector<32x128xf32> to vector<31x128xf32>
    %92 = tpu.concatenate %90, %91 in 0 : vector<1x128xf32>, vector<31x128xf32> -> vector<32x128xf32>
    %cst_33 = arith.constant 0.000000e+00 : f32
    %93 = vector.shape_cast %19 : vector<32x1xi1> to vector<32x1xi1>
    %94 = vector.broadcast %93 : vector<32x1xi1> to vector<32x128xi1>
    %95 = vector.broadcast %cst_33 : f32 to vector<32x128xf32>
    %96 = arith.select %94, %92, %95 : vector<32x128xi1>, vector<32x128xf32>
    %97 = vector.extract_strided_slice %89 {offsets = [1, 0], sizes = [31, 128], strides = [1, 1]} : vector<32x128xf32> to vector<31x128xf32>
    %98 = tpu.concatenate %97, %90 in 0 : vector<31x128xf32>, vector<1x128xf32> -> vector<32x128xf32>
    %cst_34 = arith.constant 0.000000e+00 : f32
    %99 = vector.shape_cast %37 : vector<32x1xi1> to vector<32x1xi1>
    %100 = vector.broadcast %99 : vector<32x1xi1> to vector<32x128xi1>
    %101 = vector.broadcast %cst_34 : f32 to vector<32x128xf32>
    %102 = arith.select %100, %98, %101 : vector<32x128xi1>, vector<32x128xf32>
    %cst_35 = arith.constant 0.000000e+00 : f32
    %103 = vector.broadcast %cst_35 : f32 to vector<32x8xf32>
    %104 = vector.extract_strided_slice %96 {offsets = [0, 0], sizes = [32, 120], strides = [1, 1]} : vector<32x128xf32> to vector<32x120xf32>
    %105 = tpu.concatenate %103, %104 in 1 : vector<32x8xf32>, vector<32x120xf32> -> vector<32x128xf32>
    %106 = vector.extract_strided_slice %96 {offsets = [0, 8], sizes = [32, 120], strides = [1, 1]} : vector<32x128xf32> to vector<32x120xf32>
    %107 = tpu.concatenate %106, %103 in 1 : vector<32x120xf32>, vector<32x8xf32> -> vector<32x128xf32>
    %108 = arith.truncf %105 : vector<32x128xf32> to vector<32x128xbf16>
    %c0_36 = arith.constant 0 : index
    %c0_37 = arith.constant 0 : index
    %109 = vector.load %arg6[%c0_36, %c0_37] : memref<32x1152xbf16, #tpu.memory_space<vmem>>, vector<32x128xbf16>
    tpu.vector_store %arg6[%c0_36, %c0_37], %108 {strides = array<i32>} : memref<32x1152xbf16, #tpu.memory_space<vmem>>, vector<32x128xbf16>,
    %110 = arith.truncf %96 : vector<32x128xf32> to vector<32x128xbf16>
    %c0_38 = arith.constant 0 : index
    %c128_39 = arith.constant 128 : index
    %111 = vector.load %arg6[%c0_38, %c128_39] : memref<32x1152xbf16, #tpu.memory_space<vmem>>, vector<32x128xbf16>
    tpu.vector_store %arg6[%c0_38, %c128_39], %110 {strides = array<i32>} : memref<32x1152xbf16, #tpu.memory_space<vmem>>, vector<32x128xbf16>,
    %112 = arith.truncf %107 : vector<32x128xf32> to vector<32x128xbf16>
    %c0_40 = arith.constant 0 : index
    %c256_41 = arith.constant 256 : index
    %113 = vector.load %arg6[%c0_40, %c256_41] : memref<32x1152xbf16, #tpu.memory_space<vmem>>, vector<32x128xbf16>
    tpu.vector_store %arg6[%c0_40, %c256_41], %112 {strides = array<i32>} : memref<32x1152xbf16, #tpu.memory_space<vmem>>, vector<32x128xbf16>,
    %114 = vector.extract_strided_slice %89 {offsets = [0, 0], sizes = [32, 120], strides = [1, 1]} : vector<32x128xf32> to vector<32x120xf32>
    %115 = tpu.concatenate %103, %114 in 1 : vector<32x8xf32>, vector<32x120xf32> -> vector<32x128xf32>
    %116 = vector.extract_strided_slice %89 {offsets = [0, 8], sizes = [32, 120], strides = [1, 1]} : vector<32x128xf32> to vector<32x120xf32>
    %117 = tpu.concatenate %116, %103 in 1 : vector<32x120xf32>, vector<32x8xf32> -> vector<32x128xf32>
    %118 = arith.truncf %115 : vector<32x128xf32> to vector<32x128xbf16>
    %c0_42 = arith.constant 0 : index
    %c384_43 = arith.constant 384 : index
    %119 = vector.load %arg6[%c0_42, %c384_43] : memref<32x1152xbf16, #tpu.memory_space<vmem>>, vector<32x128xbf16>
    tpu.vector_store %arg6[%c0_42, %c384_43], %118 {strides = array<i32>} : memref<32x1152xbf16, #tpu.memory_space<vmem>>, vector<32x128xbf16>,
    %120 = arith.truncf %89 : vector<32x128xf32> to vector<32x128xbf16>
    %c0_44 = arith.constant 0 : index
    %c512_45 = arith.constant 512 : index
    %121 = vector.load %arg6[%c0_44, %c512_45] : memref<32x1152xbf16, #tpu.memory_space<vmem>>, vector<32x128xbf16>
    tpu.vector_store %arg6[%c0_44, %c512_45], %120 {strides = array<i32>} : memref<32x1152xbf16, #tpu.memory_space<vmem>>, vector<32x128xbf16>,
    %122 = arith.truncf %117 : vector<32x128xf32> to vector<32x128xbf16>
    %c0_46 = arith.constant 0 : index
    %c640_47 = arith.constant 640 : index
    %123 = vector.load %arg6[%c0_46, %c640_47] : memref<32x1152xbf16, #tpu.memory_space<vmem>>, vector<32x128xbf16>
    tpu.vector_store %arg6[%c0_46, %c640_47], %122 {strides = array<i32>} : memref<32x1152xbf16, #tpu.memory_space<vmem>>, vector<32x128xbf16>,
    %124 = vector.extract_strided_slice %102 {offsets = [0, 0], sizes = [32, 120], strides = [1, 1]} : vector<32x128xf32> to vector<32x120xf32>
    %125 = tpu.concatenate %103, %124 in 1 : vector<32x8xf32>, vector<32x120xf32> -> vector<32x128xf32>
    %126 = vector.extract_strided_slice %102 {offsets = [0, 8], sizes = [32, 120], strides = [1, 1]} : vector<32x128xf32> to vector<32x120xf32>
    %127 = tpu.concatenate %126, %103 in 1 : vector<32x120xf32>, vector<32x8xf32> -> vector<32x128xf32>
    %128 = arith.truncf %125 : vector<32x128xf32> to vector<32x128xbf16>
    %c0_48 = arith.constant 0 : index
    %c768_49 = arith.constant 768 : index
    %129 = vector.load %arg6[%c0_48, %c768_49] : memref<32x1152xbf16, #tpu.memory_space<vmem>>, vector<32x128xbf16>
    tpu.vector_store %arg6[%c0_48, %c768_49], %128 {strides = array<i32>} : memref<32x1152xbf16, #tpu.memory_space<vmem>>, vector<32x128xbf16>,
    %130 = arith.truncf %102 : vector<32x128xf32> to vector<32x128xbf16>
    %c0_50 = arith.constant 0 : index
    %c896_51 = arith.constant 896 : index
    %131 = vector.load %arg6[%c0_50, %c896_51] : memref<32x1152xbf16, #tpu.memory_space<vmem>>, vector<32x128xbf16>
    tpu.vector_store %arg6[%c0_50, %c896_51], %130 {strides = array<i32>} : memref<32x1152xbf16, #tpu.memory_space<vmem>>, vector<32x128xbf16>,
    %132 = arith.truncf %127 : vector<32x128xf32> to vector<32x128xbf16>
    %c0_52 = arith.constant 0 : index
    %c1024_53 = arith.constant 1024 : index
    %133 = vector.load %arg6[%c0_52, %c1024_53] : memref<32x1152xbf16, #tpu.memory_space<vmem>>, vector<32x128xbf16>
    tpu.vector_store %arg6[%c0_52, %c1024_53], %132 {strides = array<i32>} : memref<32x1152xbf16, #tpu.memory_space<vmem>>, vector<32x128xbf16>,
    %c0_54 = arith.constant 0 : index
    %c0_55 = arith.constant 0 : index
    %134 = vector.load %arg6[%c0_54, %c0_55] : memref<32x1152xbf16, #tpu.memory_space<vmem>>, vector<32x1152xbf16>
    %c0_56 = arith.constant 0 : index
    %c0_57 = arith.constant 0 : index
    %135 = vector.load %arg3[%c0_56, %c0_57] : memref<1152x128xbf16, #tpu.memory_space<vmem>>, vector<1152x128xbf16>
    %cst_58 = arith.constant dense<0.000000e+00> : vector<32x128xf32>
    %136 = tpu.matmul %134, %135, %cst_58 {dimension_numbers = #tpu.dot_dimension_numbers<[1], [0], [0], [1], [0, 0, 1, 1], [], []>} : vector<32x1152xbf16>, vector<1152x128xbf16>, vector<32x128xf32> -> vector<32x128xf32>
    %c1 = arith.constant 1 : index
    %c0_59 = arith.constant 0 : index
    %137 = vector.load %arg4[%c1, %c0_59] : memref<2x128xf32, #tpu.memory_space<vmem>>, vector<1x128xf32>
    %138 = vector.broadcast %137 : vector<1x128xf32> to vector<32x128xf32>
    %139 = arith.addf %136, %138 : vector<32x128xf32>
    %140 = arith.addf %139, %0 : vector<32x128xf32>
    %cst_60 = arith.constant 0.000000e+00 : f32
    %141 = vector.broadcast %cst_60 : f32 to vector<32x128xf32>
    %142 = arith.maximumf %140, %141 : vector<32x128xf32>
    %c0_61 = arith.constant 0 : index
    %c0_62 = arith.constant 0 : index
    %143 = vector.load %arg5[%c0_61, %c0_62] : memref<32x128xf32, #tpu.memory_space<vmem>>, vector<32x128xf32>
    tpu.vector_store %arg5[%c0_61, %c0_62], %142 {strides = array<i32>} : memref<32x128xf32, #tpu.memory_space<vmem>>, vector<32x128xf32>,
    return
  }
  func.func @transform_0(%arg0: i32) -> (i32, i32) {
    %c0_i32 = arith.constant 0 : i32
    %c0_i32_0 = arith.constant 0 : i32
    return %arg0, %c0_i32 : i32, i32
  }
  func.func @transform_1(%arg0: i32) -> (i32, i32) {
    %c0_i32 = arith.constant 0 : i32
    %c0_i32_0 = arith.constant 0 : i32
    %c0_i32_1 = arith.constant 0 : i32
    return %c0_i32, %c0_i32_0 : i32, i32
  }
  func.func @transform_2(%arg0: i32) -> (i32, i32) {
    %c0_i32 = arith.constant 0 : i32
    %c0_i32_0 = arith.constant 0 : i32
    %c0_i32_1 = arith.constant 0 : i32
    return %c0_i32, %c0_i32_0 : i32, i32
  }
  func.func @transform_3(%arg0: i32) -> (i32, i32) {
    %c0_i32 = arith.constant 0 : i32
    %c0_i32_0 = arith.constant 0 : i32
    %c0_i32_1 = arith.constant 0 : i32
    return %c0_i32, %c0_i32_0 : i32, i32
  }
  func.func @transform_4(%arg0: i32) -> (i32, i32) {
    %c0_i32 = arith.constant 0 : i32
    %c0_i32_0 = arith.constant 0 : i32
    return %arg0, %c0_i32 : i32, i32
  }
}

</mosaic_0001>

<llo_original>
// kernel: tpu_custom_call.1
$region0: #{tpu_custom_call.1}
  #allocation0 [shape = 'u32[]', space=smem, size = 0x4, offset = 0x4, fixed_abs, tag = 'smem constant byte address 0x4 - core index']
  #allocation1 [shape = 'u32[144,128]{1,0:T(1,128)}', space=vmem, size = 0x12000, scoped, tag = 'internal scratch']
  #allocation2 [shape = 'bf16[32,1152]{1,0:T(16,128)(2,1)}', space=vmem, size = 0x12000, scoped, tag = 'scratch operand']
  %s0 = inlined_call_operand.hbm [shape: f32[32,128], index: 0, kind: input, shape index: {}]
  %s1 = inlined_call_operand.hbm [shape: bf16[1152,128], index: 1, kind: input, shape index: {}]
  %s2 = inlined_call_operand.hbm [shape: bf16[1152,128], index: 2, kind: input, shape index: {}]
  %s3 = inlined_call_operand.vmem [shape: f32[2,128], index: 3, kind: input, shape index: {}]
  %s4 = inlined_call_operand.hbm [shape: f32[32,128], index: 4, kind: output, shape index: {}]
  %s5 = sld [smem:[#allocation0]]
  $region38: #{tpu_custom_call.1} parent=0
    _
  %s7 = ssub.s32 1, %s5
  %s8 = scalar_select 0, %s7, %s5
  $region1: #{tpu_custom_call.1} parent=0
    #allocation3 [shape = 'u8[16384]{0}', space=vmem, size = 0x4000, scoped, tag = 'input window, operand 0, single buffered']
    #allocation4 [shape = 's32[1]{0}', space=sflag, size = 0x4, scoped, tag = 'scoped memory for tpu_custom_call.1']
    #allocation5 [shape = 's32[1]{0}', space=sflag, size = 0x4, scoped, tag = 'scoped memory for tpu_custom_call.1']
    #allocation6 [shape = 'u8[294912]{0}', space=vmem, size = 0x48000, scoped, tag = 'input window, operand 1, single buffered']
    #allocation7 [shape = 's32[1]{0}', space=sflag, size = 0x4, scoped, tag = 'scoped memory for tpu_custom_call.1']
    #allocation8 [shape = 'u8[294912]{0}', space=vmem, size = 0x48000, scoped, tag = 'input window, operand 2, single buffered']
    #allocation9 [shape = 'u8[16384]{0}', space=vmem, size = 0x4000, scoped, tag = 'output window, operand 0, single buffered']
    %9 = vsyncpa [#allocation4], 0
    %10 = vsyncpa [#allocation7], 0
    %11 = vsyncpa [#allocation5], 0
    // Predicated region
    $region2: #{tpu_custom_call.1} parent=1 // pred_check
      _
    $region3: #{tpu_custom_call.1} parent=1 // pred_check_branch
      %13 = sbr.rel (0) target = $region5
    $region4: #{tpu_custom_call.1} parent=1 // pred_region
      %s15 = ssub.s32 512, 512
      %16 = vsyncadd [#allocation4], %s15
      %s17 = sshll.u32 [#allocation3], 4
      %s18 = int_to_ptr.vmem [resolvable:$true] %s17
      %23 = dma.hbm_to_vmem [thread:$0]  %s0, 512, %s18, [#allocation4], 128, 128, 8
    $region5: #{tpu_custom_call.1} parent=1 // pred_fallthru
      _
    // Predicated region
    $region6: #{tpu_custom_call.1} parent=1 // pred_check
      _
    $region7: #{tpu_custom_call.1} parent=1 // pred_check_branch
      %25 = sbr.rel (0) target = $region9
    $region8: #{tpu_custom_call.1} parent=1 // pred_region
      %s27 = ssub.s32 9216, 9216
      %28 = vsyncadd [#allocation7], %s27
      %s29 = sshll.u32 [#allocation6], 4
      %s30 = int_to_ptr.vmem [resolvable:$true] %s29
      %35 = dma.hbm_to_vmem [thread:$0]  %s1, 9216, %s30, [#allocation7], 64, 64, 4
    $region9: #{tpu_custom_call.1} parent=1 // pred_fallthru
      _
    // Predicated region
    $region10: #{tpu_custom_call.1} parent=1 // pred_check
      _
    $region11: #{tpu_custom_call.1} parent=1 // pred_check_branch
      %37 = sbr.rel (0) target = $region13
    $region12: #{tpu_custom_call.1} parent=1 // pred_region
      %s39 = ssub.s32 9216, 9216
      %40 = vsyncadd [#allocation7], %s39
      %s41 = sshll.u32 [#allocation8], 4
      %s42 = int_to_ptr.vmem [resolvable:$true] %s41
      %47 = dma.hbm_to_vmem [thread:$0]  %s2, 9216, %s42, [#allocation7], 64, 64, 4
    $region13: #{tpu_custom_call.1} parent=1 // pred_fallthru
      _
    // Predicated region
    $region14: #{tpu_custom_call.1} parent=1 // pred_check
      _
    $region15: #{tpu_custom_call.1} parent=1 // pred_check_branch
      %49 = sbr.rel (0) target = $region17
    $region16: #{tpu_custom_call.1} parent=1 // pred_region
      _
    $region17: #{tpu_custom_call.1} parent=1 // pred_fallthru
      _
    // Predicated region
    $region18: #{tpu_custom_call.1} parent=1 // pred_check
      _
    $region19: #{tpu_custom_call.1} parent=1 // pred_check_branch
      %51 = sbr.rel (0) target = $region21
    $region20: #{tpu_custom_call.1} parent=1 // pred_region
      %52 = dma.done [#allocation4], 512
    $region21: #{tpu_custom_call.1} parent=1 // pred_fallthru
      _
    // Predicated region
    $region22: #{tpu_custom_call.1} parent=1 // pred_check
      _
    $region23: #{tpu_custom_call.1} parent=1 // pred_check_branch
      %54 = sbr.rel (0) target = $region25
    $region24: #{tpu_custom_call.1} parent=1 // pred_region
      %55 = dma.done [#allocation7], 9216
    $region25: #{tpu_custom_call.1} parent=1 // pred_fallthru
      _
    // Predicated region
    $region26: #{tpu_custom_call.1} parent=1 // pred_check
      _
    $region27: #{tpu_custom_call.1} parent=1 // pred_check_branch
      %57 = sbr.rel (0) target = $region29
    $region28: #{tpu_custom_call.1} parent=1 // pred_region
      %58 = dma.done [#allocation7], 9216
    $region29: #{tpu_custom_call.1} parent=1 // pred_fallthru
      _
    %v60 = vld [vmem:[#allocation3] sm:$0xff]
    %v61 = vld [vmem:[#allocation3 + $0x8] sm:$0xff]
    %v62 = vld [vmem:[#allocation3 + $0x10] sm:$0xff]
    %v63 = vld [vmem:[#allocation3 + $0x18] sm:$0xff]
    %v64 = vlaneseq
    %v65 = vshrl.u32 %v64, 7
    %v66 = vadd.s32 %v65, 8
    %v67 = vadd.s32 %v65, 16
    %v68 = vadd.s32 %v65, 24
    %vm69 = vcmp.lt.s32.totalorder %v65, 0
    %v70 = vsub.s32 0, %v65
    %v71 = vsel %vm69, %v70, %v65
    %v72 = vshrl.u32 %v71, 4
    %v73 = vand.u32 %v71, 15
    %v74 = vsub.s32 0, %v73
    %v75 = vsel %vm69, %v74, %v73
    %vm76 = vcmp.lt.s32.totalorder %v66, 0
    %v77 = vsub.s32 0, %v66
    %v78 = vsel %vm76, %v77, %v66
    %v79 = vshrl.u32 %v78, 4
    %v80 = vand.u32 %v78, 15
    %v81 = vsub.s32 0, %v80
    %v82 = vsel %vm76, %v81, %v80
    %vm83 = vcmp.lt.s32.totalorder %v67, 0
    %v84 = vsub.s32 0, %v67
    %v85 = vsel %vm83, %v84, %v67
    %v86 = vshrl.u32 %v85, 4
    %v87 = vand.u32 %v85, 15
    %v88 = vsub.s32 0, %v87
    %v89 = vsel %vm83, %v88, %v87
    %vm90 = vcmp.lt.s32.totalorder %v68, 0
    %v91 = vsub.s32 0, %v68
    %v92 = vsel %vm90, %v91, %v68
    %v93 = vshrl.u32 %v92, 4
    %v94 = vand.u32 %v92, 15
    %v95 = vsub.s32 0, %v94
    %v96 = vsel %vm90, %v95, %v94
    %vm97 = vcmp.ne.s32.totalorder %v75, 0
    %vm98 = vcmp.ne.s32.totalorder %v82, 0
    %vm99 = vcmp.ne.s32.totalorder %v89, 0
    %vm100 = vcmp.ne.s32.totalorder %v96, 0
    %vm101 = vcmp.lt.s32.totalorder %v75, 0
    %vm102 = vcmp.lt.s32.totalorder %v82, 0
    %vm103 = vcmp.lt.s32.totalorder %v89, 0
    %vm104 = vcmp.lt.s32.totalorder %v96, 0
    %vm105 = vmand %vm101, %vm97
    %vm106 = vmand %vm102, %vm98
    %vm107 = vmand %vm103, %vm99
    %vm108 = vmand %vm104, %vm100
    %v109 = vadd.s32 %v75, 16
    %v110 = vadd.s32 %v82, 16
    %v111 = vadd.s32 %v89, 16
    %v112 = vadd.s32 %v96, 16
    %v113 = vsel %vm105, %v109, %v75
    %v114 = vsel %vm106, %v110, %v82
    %v115 = vsel %vm107, %v111, %v89
    %v116 = vsel %vm108, %v112, %v96
    %vm117 = vcmp.ne.s32.totalorder %v113, 0
    %vm118 = vcmp.ne.s32.totalorder %v114, 0
    %vm119 = vcmp.ne.s32.totalorder %v115, 0
    %vm120 = vcmp.ne.s32.totalorder %v116, 0
    %vm121 = vcmp.ne.s32.totalorder %v113, 15
    %vm122 = vcmp.ne.s32.totalorder %v114, 15
    %vm123 = vcmp.ne.s32.totalorder %v115, 15
    %vm124 = vcmp.ne.s32.totalorder %v116, 15
    %vm129 = vcmask 1040384
    %v130 = vrot.slane %v60, 7
    %v131 = vrot.slane %v61, 7
    %v132 = vsel %vm129, %v130, %v131
    %v133 = vrot.slane %v62, 7
    %v134 = vsel %vm129, %v131, %v133
    %v135 = vrot.slane %v63, 7
    %v136 = vsel %vm129, %v133, %v135
    %v141 = vsel %vm129, 0.0, %v130
    %v142 = vsel %vm117, 1, 0
    %v143 = vsel %vm118, 1, 0
    %v144 = vsel %vm119, 1, 0
    %v145 = vsel %vm120, 1, 0
    %vm146 = vcmp.eq.s32.totalorder %v142, 1
    %vm147 = vcmp.eq.s32.totalorder %v143, 1
    %vm148 = vcmp.eq.s32.totalorder %v144, 1
    %vm149 = vcmp.eq.s32.totalorder %v145, 1
    %v150 = vsel %vm146, %v141, 0.0
    %v151 = vsel %vm147, %v132, 0.0
    %v152 = vsel %vm148, %v134, 0.0
    %v153 = vsel %vm149, %v136, 0.0
    %vm154 = vcmask 1046528
    %v155 = vrot.slane %v60, 1
    %v156 = vrot.slane %v61, 1
    %v157 = vsel %vm154, %v155, %v156
    %v158 = vrot.slane %v62, 1
    %v159 = vsel %vm154, %v156, %v158
    %v160 = vrot.slane %v63, 1
    %v161 = vsel %vm154, %v158, %v160
    %v166 = vsel %vm154, %v160, 0.0
    %v167 = vsel %vm121, 1, 0
    %v168 = vsel %vm122, 1, 0
    %v169 = vsel %vm123, 1, 0
    %v170 = vsel %vm124, 1, 0
    %vm171 = vcmp.eq.s32.totalorder %v167, 1
    %vm172 = vcmp.eq.s32.totalorder %v168, 1
    %vm173 = vcmp.eq.s32.totalorder %v169, 1
    %vm174 = vcmp.eq.s32.totalorder %v170, 1
    %v175 = vsel %vm171, %v157, 0.0
    %v176 = vsel %vm172, %v159, 0.0
    %v177 = vsel %vm173, %v161, 0.0
    %v178 = vsel %vm174, %v166, 0.0
    %183 = vrot.lane.b32.xlu0 %v150, 8
    %v184 = vpop.permute.xlu0 %183
    %185 = vrot.lane.b32.xlu0 %v151, 8
    %v186 = vpop.permute.xlu0 %185
    %187 = vrot.lane.b32.xlu0 %v152, 8
    %v188 = vpop.permute.xlu0 %187
    %189 = vrot.lane.b32.xlu0 %v153, 8
    %v190 = vpop.permute.xlu0 %189
    %vm195 = vcmask 64512
    %v196 = vsel %vm195, 0.0, %v184
    %v197 = vsel %vm195, 0.0, %v186
    %v198 = vsel %vm195, 0.0, %v188
    %v199 = vsel %vm195, 0.0, %v190
    %200 = vrot.lane.b32.xlu0 %v150, 120
    %v201 = vpop.permute.xlu0 %200
    %202 = vrot.lane.b32.xlu0 %v151, 120
    %v203 = vpop.permute.xlu0 %202
    %204 = vrot.lane.b32.xlu0 %v152, 120
    %v205 = vpop.permute.xlu0 %204
    %206 = vrot.lane.b32.xlu0 %v153, 120
    %v207 = vpop.permute.xlu0 %206
    %vm212 = vcmask 982016
    %v213 = vsel %vm212, %v201, 0.0
    %v214 = vsel %vm212, %v203, 0.0
    %v215 = vsel %vm212, %v205, 0.0
    %v216 = vsel %vm212, %v207, 0.0
    %v217 = vpack.c.bf16 %v197, %v196
    %v218 = vpack.c.bf16 %v199, %v198
    %219 = vst [vmem:[#allocation2] sm:$0xff] %v217
    %220 = vst [vmem:[#allocation2 + $0x48] sm:$0xff] %v218
    %v221 = vpack.c.bf16 %v151, %v150
    %v222 = vpack.c.bf16 %v153, %v152
    %223 = vst [vmem:[#allocation2 + $0x8] sm:$0xff] %v221
    %224 = vst [vmem:[#allocation2 + $0x50] sm:$0xff] %v222
    %v225 = vpack.c.bf16 %v214, %v213
    %v226 = vpack.c.bf16 %v216, %v215
    %227 = vst [vmem:[#allocation2 + $0x10] sm:$0xff] %v225
    %228 = vst [vmem:[#allocation2 + $0x58] sm:$0xff] %v226
    %229 = vrot.lane.b32.xlu0 %v60, 8
    %v230 = vpop.permute.xlu0 %229
    %231 = vrot.lane.b32.xlu0 %v61, 8
    %v232 = vpop.permute.xlu0 %231
    %233 = vrot.lane.b32.xlu0 %v62, 8
    %v234 = vpop.permute.xlu0 %233
    %235 = vrot.lane.b32.xlu0 %v63, 8
    %v236 = vpop.permute.xlu0 %235
    %v241 = vsel %vm195, 0.0, %v230
    %v242 = vsel %vm195, 0.0, %v232
    %v243 = vsel %vm195, 0.0, %v234
    %v244 = vsel %vm195, 0.0, %v236
    %245 = vrot.lane.b32.xlu0 %v60, 120
    %v246 = vpop.permute.xlu0 %245
    %247 = vrot.lane.b32.xlu0 %v61, 120
    %v248 = vpop.permute.xlu0 %247
    %249 = vrot.lane.b32.xlu0 %v62, 120
    %v250 = vpop.permute.xlu0 %249
    %251 = vrot.lane.b32.xlu0 %v63, 120
    %v252 = vpop.permute.xlu0 %251
    %v257 = vsel %vm212, %v246, 0.0
    %v258 = vsel %vm212, %v248, 0.0
    %v259 = vsel %vm212, %v250, 0.0
    %v260 = vsel %vm212, %v252, 0.0
    %v261 = vpack.c.bf16 %v242, %v241
    %v262 = vpack.c.bf16 %v244, %v243
    %263 = vst [vmem:[#allocation2 + $0x18] sm:$0xff] %v261
    %264 = vst [vmem:[#allocation2 + $0x60] sm:$0xff] %v262
    %v265 = vpack.c.bf16 %v61, %v60
    %v266 = vpack.c.bf16 %v63, %v62
    %267 = vst [vmem:[#allocation2 + $0x20] sm:$0xff] %v265
    %268 = vst [vmem:[#allocation2 + $0x68] sm:$0xff] %v266
    %v269 = vpack.c.bf16 %v258, %v257
    %v270 = vpack.c.bf16 %v260, %v259
    %271 = vst [vmem:[#allocation2 + $0x28] sm:$0xff] %v269
    %272 = vst [vmem:[#allocation2 + $0x70] sm:$0xff] %v270
    %277 = vrot.lane.b32.xlu0 %v175, 8
    %v278 = vpop.permute.xlu0 %277
    %279 = vrot.lane.b32.xlu0 %v176, 8
    %v280 = vpop.permute.xlu0 %279
    %281 = vrot.lane.b32.xlu0 %v177, 8
    %v282 = vpop.permute.xlu0 %281
    %283 = vrot.lane.b32.xlu0 %v178, 8
    %v284 = vpop.permute.xlu0 %283
    %v289 = vsel %vm195, 0.0, %v278
    %v290 = vsel %vm195, 0.0, %v280
    %v291 = vsel %vm195, 0.0, %v282
    %v292 = vsel %vm195, 0.0, %v284
    %293 = vrot.lane.b32.xlu0 %v175, 120
    %v294 = vpop.permute.xlu0 %293
    %295 = vrot.lane.b32.xlu0 %v176, 120
    %v296 = vpop.permute.xlu0 %295
    %297 = vrot.lane.b32.xlu0 %v177, 120
    %v298 = vpop.permute.xlu0 %297
    %299 = vrot.lane.b32.xlu0 %v178, 120
    %v300 = vpop.permute.xlu0 %299
    %v305 = vsel %vm212, %v294, 0.0
    %v306 = vsel %vm212, %v296, 0.0
    %v307 = vsel %vm212, %v298, 0.0
    %v308 = vsel %vm212, %v300, 0.0
    %v309 = vpack.c.bf16 %v290, %v289
    %v310 = vpack.c.bf16 %v292, %v291
    %311 = vst [vmem:[#allocation2 + $0x30] sm:$0xff] %v309
    %312 = vst [vmem:[#allocation2 + $0x78] sm:$0xff] %v310
    %v313 = vpack.c.bf16 %v176, %v175
    %v314 = vpack.c.bf16 %v178, %v177
    %315 = vst [vmem:[#allocation2 + $0x38] sm:$0xff] %v313
    %316 = vst [vmem:[#allocation2 + $0x80] sm:$0xff] %v314
    %v317 = vpack.c.bf16 %v306, %v305
    %v318 = vpack.c.bf16 %v308, %v307
    %319 = vst [vmem:[#allocation2 + $0x40] sm:$0xff] %v317
    %320 = vst [vmem:[#allocation2 + $0x88] sm:$0xff] %v318
    %v321 = vld [vmem:[#allocation2] sm:$0xff]
    %v322 = vld [vmem:[#allocation2 + $0x8] sm:$0xff]
    %v323 = vld [vmem:[#allocation2 + $0x10] sm:$0xff]
    %v324 = vld [vmem:[#allocation2 + $0x18] sm:$0xff]
    %v325 = vld [vmem:[#allocation2 + $0x20] sm:$0xff]
    %v326 = vld [vmem:[#allocation2 + $0x28] sm:$0xff]
    %v327 = vld [vmem:[#allocation2 + $0x30] sm:$0xff]
    %v328 = vld [vmem:[#allocation2 + $0x38] sm:$0xff]
    %v329 = vld [vmem:[#allocation2 + $0x40] sm:$0xff]
    %v330 = vld [vmem:[#allocation2 + $0x48] sm:$0xff]
    %v331 = vld [vmem:[#allocation2 + $0x50] sm:$0xff]
    %v332 = vld [vmem:[#allocation2 + $0x58] sm:$0xff]
    %v333 = vld [vmem:[#allocation2 + $0x60] sm:$0xff]
    %v334 = vld [vmem:[#allocation2 + $0x68] sm:$0xff]
    %v335 = vld [vmem:[#allocation2 + $0x70] sm:$0xff]
    %v336 = vld [vmem:[#allocation2 + $0x78] sm:$0xff]
    %v337 = vld [vmem:[#allocation2 + $0x80] sm:$0xff]
    %v338 = vld [vmem:[#allocation2 + $0x88] sm:$0xff]
    %v339 = vld [vmem:[#allocation6] sm:$0xf]
    %v340 = vld [vmem:[#allocation6 + $0x4] sm:$0xf]
    %v341 = vld [vmem:[#allocation6 + $0x8] sm:$0xf]
    %v342 = vld [vmem:[#allocation6 + $0xc] sm:$0xf]
    %v343 = vld [vmem:[#allocation6 + $0x10] sm:$0xf]
    %v344 = vld [vmem:[#allocation6 + $0x14] sm:$0xf]
    %v345 = vld [vmem:[#allocation6 + $0x18] sm:$0xf]
    %v346 = vld [vmem:[#allocation6 + $0x1c] sm:$0xf]
    %v347 = vld [vmem:[#allocation6 + $0x20] sm:$0xf]
    %v348 = vld [vmem:[#allocation6 + $0x24] sm:$0xf]
    %v349 = vld [vmem:[#allocation6 + $0x28] sm:$0xf]
    %v350 = vld [vmem:[#allocation6 + $0x2c] sm:$0xf]
    %v351 = vld [vmem:[#allocation6 + $0x30] sm:$0xf]
    %v352 = vld [vmem:[#allocation6 + $0x34] sm:$0xf]
    %v353 = vld [vmem:[#allocation6 + $0x38] sm:$0xf]
    %v354 = vld [vmem:[#allocation6 + $0x3c] sm:$0xf]
    %v355 = vld [vmem:[#allocation6 + $0x40] sm:$0xf]
    %v356 = vld [vmem:[#allocation6 + $0x44] sm:$0xf]
    %v357 = vld [vmem:[#allocation6 + $0x48] sm:$0xf]
    %v358 = vld [vmem:[#allocation6 + $0x4c] sm:$0xf]
    %v359 = vld [vmem:[#allocation6 + $0x50] sm:$0xf]
    %v360 = vld [vmem:[#allocation6 + $0x54] sm:$0xf]
    %v361 = vld [vmem:[#allocation6 + $0x58] sm:$0xf]
    %v362 = vld [vmem:[#allocation6 + $0x5c] sm:$0xf]
    %v363 = vld [vmem:[#allocation6 + $0x60] sm:$0xf]
    %v364 = vld [vmem:[#allocation6 + $0x64] sm:$0xf]
    %v365 = vld [vmem:[#allocation6 + $0x68] sm:$0xf]
    %v366 = vld [vmem:[#allocation6 + $0x6c] sm:$0xf]
    %v367 = vld [vmem:[#allocation6 + $0x70] sm:$0xf]
    %v368 = vld [vmem:[#allocation6 + $0x74] sm:$0xf]
    %v369 = vld [vmem:[#allocation6 + $0x78] sm:$0xf]
    %v370 = vld [vmem:[#allocation6 + $0x7c] sm:$0xf]
    %v371 = vld [vmem:[#allocation6 + $0x80] sm:$0xf]
    %v372 = vld [vmem:[#allocation6 + $0x84] sm:$0xf]
    %v373 = vld [vmem:[#allocation6 + $0x88] sm:$0xf]
    %v374 = vld [vmem:[#allocation6 + $0x8c] sm:$0xf]
    %v375 = vld [vmem:[#allocation6 + $0x90] sm:$0xf]
    %v376 = vld [vmem:[#allocation6 + $0x94] sm:$0xf]
    %v377 = vld [vmem:[#allocation6 + $0x98] sm:$0xf]
    %v378 = vld [vmem:[#allocation6 + $0x9c] sm:$0xf]
    %v379 = vld [vmem:[#allocation6 + $0xa0] sm:$0xf]
    %v380 = vld [vmem:[#allocation6 + $0xa4] sm:$0xf]
    %v381 = vld [vmem:[#allocation6 + $0xa8] sm:$0xf]
    %v382 = vld [vmem:[#allocation6 + $0xac] sm:$0xf]
    %v383 = vld [vmem:[#allocation6 + $0xb0] sm:$0xf]
    %v384 = vld [vmem:[#allocation6 + $0xb4] sm:$0xf]
    %v385 = vld [vmem:[#allocation6 + $0xb8] sm:$0xf]
    %v386 = vld [vmem:[#allocation6 + $0xbc] sm:$0xf]
    %v387 = vld [vmem:[#allocation6 + $0xc0] sm:$0xf]
    %v388 = vld [vmem:[#allocation6 + $0xc4] sm:$0xf]
    %v389 = vld [vmem:[#allocation6 + $0xc8] sm:$0xf]
    %v390 = vld [vmem:[#allocation6 + $0xcc] sm:$0xf]
    %v391 = vld [vmem:[#allocation6 + $0xd0] sm:$0xf]
    %v392 = vld [vmem:[#allocation6 + $0xd4] sm:$0xf]
    %v393 = vld [vmem:[#allocation6 + $0xd8] sm:$0xf]
    %v394 = vld [vmem:[#allocation6 + $0xdc] sm:$0xf]
    %v395 = vld [vmem:[#allocation6 + $0xe0] sm:$0xf]
    %v396 = vld [vmem:[#allocation6 + $0xe4] sm:$0xf]
    %v397 = vld [vmem:[#allocation6 + $0xe8] sm:$0xf]
    %v398 = vld [vmem:[#allocation6 + $0xec] sm:$0xf]
    %v399 = vld [vmem:[#allocation6 + $0xf0] sm:$0xf]
    %v400 = vld [vmem:[#allocation6 + $0xf4] sm:$0xf]
    %v401 = vld [vmem:[#allocation6 + $0xf8] sm:$0xf]
    %v402 = vld [vmem:[#allocation6 + $0xfc] sm:$0xf]
    %v403 = vld [vmem:[#allocation6 + $0x100] sm:$0xf]
    %v404 = vld [vmem:[#allocation6 + $0x104] sm:$0xf]
    %v405 = vld [vmem:[#allocation6 + $0x108] sm:$0xf]
    %v406 = vld [vmem:[#allocation6 + $0x10c] sm:$0xf]
    %v407 = vld [vmem:[#allocation6 + $0x110] sm:$0xf]
    %v408 = vld [vmem:[#allocation6 + $0x114] sm:$0xf]
    %v409 = vld [vmem:[#allocation6 + $0x118] sm:$0xf]
    %v410 = vld [vmem:[#allocation6 + $0x11c] sm:$0xf]
    %v411 = vld [vmem:[#allocation6 + $0x120] sm:$0xf]
    %v412 = vld [vmem:[#allocation6 + $0x124] sm:$0xf]
    %v413 = vld [vmem:[#allocation6 + $0x128] sm:$0xf]
    %v414 = vld [vmem:[#allocation6 + $0x12c] sm:$0xf]
    %v415 = vld [vmem:[#allocation6 + $0x130] sm:$0xf]
    %v416 = vld [vmem:[#allocation6 + $0x134] sm:$0xf]
    %v417 = vld [vmem:[#allocation6 + $0x138] sm:$0xf]
    %v418 = vld [vmem:[#allocation6 + $0x13c] sm:$0xf]
    %v419 = vld [vmem:[#allocation6 + $0x140] sm:$0xf]
    %v420 = vld [vmem:[#allocation6 + $0x144] sm:$0xf]
    %v421 = vld [vmem:[#allocation6 + $0x148] sm:$0xf]
    %v422 = vld [vmem:[#allocation6 + $0x14c] sm:$0xf]
    %v423 = vld [vmem:[#allocation6 + $0x150] sm:$0xf]
    %v424 = vld [vmem:[#allocation6 + $0x154] sm:$0xf]
    %v425 = vld [vmem:[#allocation6 + $0x158] sm:$0xf]
    %v426 = vld [vmem:[#allocation6 + $0x15c] sm:$0xf]
    %v427 = vld [vmem:[#allocation6 + $0x160] sm:$0xf]
    %v428 = vld [vmem:[#allocation6 + $0x164] sm:$0xf]
    %v429 = vld [vmem:[#allocation6 + $0x168] sm:$0xf]
    %v430 = vld [vmem:[#allocation6 + $0x16c] sm:$0xf]
    %v431 = vld [vmem:[#allocation6 + $0x170] sm:$0xf]
    %v432 = vld [vmem:[#allocation6 + $0x174] sm:$0xf]
    %v433 = vld [vmem:[#allocation6 + $0x178] sm:$0xf]
    %v434 = vld [vmem:[#allocation6 + $0x17c] sm:$0xf]
    %v435 = vld [vmem:[#allocation6 + $0x180] sm:$0xf]
    %v436 = vld [vmem:[#allocation6 + $0x184] sm:$0xf]
    %v437 = vld [vmem:[#allocation6 + $0x188] sm:$0xf]
    %v438 = vld [vmem:[#allocation6 + $0x18c] sm:$0xf]
    %v439 = vld [vmem:[#allocation6 + $0x190] sm:$0xf]
    %v440 = vld [vmem:[#allocation6 + $0x194] sm:$0xf]
    %v441 = vld [vmem:[#allocation6 + $0x198] sm:$0xf]
    %v442 = vld [vmem:[#allocation6 + $0x19c] sm:$0xf]
    %v443 = vld [vmem:[#allocation6 + $0x1a0] sm:$0xf]
    %v444 = vld [vmem:[#allocation6 + $0x1a4] sm:$0xf]
    %v445 = vld [vmem:[#allocation6 + $0x1a8] sm:$0xf]
    %v446 = vld [vmem:[#allocation6 + $0x1ac] sm:$0xf]
    %v447 = vld [vmem:[#allocation6 + $0x1b0] sm:$0xf]
    %v448 = vld [vmem:[#allocation6 + $0x1b4] sm:$0xf]
    %v449 = vld [vmem:[#allocation6 + $0x1b8] sm:$0xf]
    %v450 = vld [vmem:[#allocation6 + $0x1bc] sm:$0xf]
    %v451 = vld [vmem:[#allocation6 + $0x1c0] sm:$0xf]
    %v452 = vld [vmem:[#allocation6 + $0x1c4] sm:$0xf]
    %v453 = vld [vmem:[#allocation6 + $0x1c8] sm:$0xf]
    %v454 = vld [vmem:[#allocation6 + $0x1cc] sm:$0xf]
    %v455 = vld [vmem:[#allocation6 + $0x1d0] sm:$0xf]
    %v456 = vld [vmem:[#allocation6 + $0x1d4] sm:$0xf]
    %v457 = vld [vmem:[#allocation6 + $0x1d8] sm:$0xf]
    %v458 = vld [vmem:[#allocation6 + $0x1dc] sm:$0xf]
    %v459 = vld [vmem:[#allocation6 + $0x1e0] sm:$0xf]
    %v460 = vld [vmem:[#allocation6 + $0x1e4] sm:$0xf]
    %v461 = vld [vmem:[#allocation6 + $0x1e8] sm:$0xf]
    %v462 = vld [vmem:[#allocation6 + $0x1ec] sm:$0xf]
    %v463 = vld [vmem:[#allocation6 + $0x1f0] sm:$0xf]
    %v464 = vld [vmem:[#allocation6 + $0x1f4] sm:$0xf]
    %v465 = vld [vmem:[#allocation6 + $0x1f8] sm:$0xf]
    %v466 = vld [vmem:[#allocation6 + $0x1fc] sm:$0xf]
    %v467 = vld [vmem:[#allocation6 + $0x200] sm:$0xf]
    %v468 = vld [vmem:[#allocation6 + $0x204] sm:$0xf]
    %v469 = vld [vmem:[#allocation6 + $0x208] sm:$0xf]
    %v470 = vld [vmem:[#allocation6 + $0x20c] sm:$0xf]
    %v471 = vld [vmem:[#allocation6 + $0x210] sm:$0xf]
    %v472 = vld [vmem:[#allocation6 + $0x214] sm:$0xf]
    %v473 = vld [vmem:[#allocation6 + $0x218] sm:$0xf]
    %v474 = vld [vmem:[#allocation6 + $0x21c] sm:$0xf]
    %v475 = vld [vmem:[#allocation6 + $0x220] sm:$0xf]
    %v476 = vld [vmem:[#allocation6 + $0x224] sm:$0xf]
    %v477 = vld [vmem:[#allocation6 + $0x228] sm:$0xf]
    %v478 = vld [vmem:[#allocation6 + $0x22c] sm:$0xf]
    %v479 = vld [vmem:[#allocation6 + $0x230] sm:$0xf]
    %v480 = vld [vmem:[#allocation6 + $0x234] sm:$0xf]
    %v481 = vld [vmem:[#allocation6 + $0x238] sm:$0xf]
    %v482 = vld [vmem:[#allocation6 + $0x23c] sm:$0xf]
    %v483 = vld [vmem:[%s3] sm:$0x1]
    %v484 = vlaneseq
    %v485 = vshrl.u32 %v484, 7
    %v486 = vsub.s32 0, %v485
    %v487 = vrot.slane %v483, %v486
    %v632 = vunpack.c.l.b16 %v339
    %v633 = vunpack.c.l.b16 %v340
    %v634 = vunpack.c.l.b16 %v341
    %v635 = vunpack.c.l.b16 %v342
    %v636 = vunpack.c.l.b16 %v343
    %v637 = vunpack.c.l.b16 %v344
    %v638 = vunpack.c.l.b16 %v345
    %v639 = vunpack.c.l.b16 %v346
    %v640 = vunpack.c.l.b16 %v347
    %v641 = vunpack.c.l.b16 %v348
    %v642 = vunpack.c.l.b16 %v349
    %v643 = vunpack.c.l.b16 %v350
    %v644 = vunpack.c.l.b16 %v351
    %v645 = vunpack.c.l.b16 %v352
    %v646 = vunpack.c.l.b16 %v353
    %v647 = vunpack.c.l.b16 %v354
    %v648 = vunpack.c.l.b16 %v355
    %v649 = vunpack.c.l.b16 %v356
    %v650 = vunpack.c.l.b16 %v357
    %v651 = vunpack.c.l.b16 %v358
    %v652 = vunpack.c.l.b16 %v359
    %v653 = vunpack.c.l.b16 %v360
    %v654 = vunpack.c.l.b16 %v361
    %v655 = vunpack.c.l.b16 %v362
    %v656 = vunpack.c.l.b16 %v363
    %v657 = vunpack.c.l.b16 %v364
    %v658 = vunpack.c.l.b16 %v365
    %v659 = vunpack.c.l.b16 %v366
    %v660 = vunpack.c.l.b16 %v367
    %v661 = vunpack.c.l.b16 %v368
    %v662 = vunpack.c.l.b16 %v369
    %v663 = vunpack.c.l.b16 %v370
    %v664 = vunpack.c.l.b16 %v371
    %v665 = vunpack.c.l.b16 %v372
    %v666 = vunpack.c.l.b16 %v373
    %v667 = vunpack.c.l.b16 %v374
    %v668 = vunpack.c.l.b16 %v375
    %v669 = vunpack.c.l.b16 %v376
    %v670 = vunpack.c.l.b16 %v377
    %v671 = vunpack.c.l.b16 %v378
    %v672 = vunpack.c.l.b16 %v379
    %v673 = vunpack.c.l.b16 %v380
    %v674 = vunpack.c.l.b16 %v381
    %v675 = vunpack.c.l.b16 %v382
    %v676 = vunpack.c.l.b16 %v383
    %v677 = vunpack.c.l.b16 %v384
    %v678 = vunpack.c.l.b16 %v385
    %v679 = vunpack.c.l.b16 %v386
    %v680 = vunpack.c.l.b16 %v387
    %v681 = vunpack.c.l.b16 %v388
    %v682 = vunpack.c.l.b16 %v389
    %v683 = vunpack.c.l.b16 %v390
    %v684 = vunpack.c.l.b16 %v391
    %v685 = vunpack.c.l.b16 %v392
    %v686 = vunpack.c.l.b16 %v393
    %v687 = vunpack.c.l.b16 %v394
    %v688 = vunpack.c.l.b16 %v395
    %v689 = vunpack.c.l.b16 %v396
    %v690 = vunpack.c.l.b16 %v397
    %v691 = vunpack.c.l.b16 %v398
    %v692 = vunpack.c.l.b16 %v399
    %v693 = vunpack.c.l.b16 %v400
    %v694 = vunpack.c.l.b16 %v401
    %v695 = vunpack.c.l.b16 %v402
    %v696 = vunpack.c.l.b16 %v403
    %v697 = vunpack.c.l.b16 %v404
    %v698 = vunpack.c.l.b16 %v405
    %v699 = vunpack.c.l.b16 %v406
    %v700 = vunpack.c.l.b16 %v407
    %v701 = vunpack.c.l.b16 %v408
    %v702 = vunpack.c.l.b16 %v409
    %v703 = vunpack.c.l.b16 %v410
    %v704 = vunpack.c.l.b16 %v411
    %v705 = vunpack.c.l.b16 %v412
    %v706 = vunpack.c.l.b16 %v413
    %v707 = vunpack.c.l.b16 %v414
    %v708 = vunpack.c.l.b16 %v415
    %v709 = vunpack.c.l.b16 %v416
    %v710 = vunpack.c.l.b16 %v417
    %v711 = vunpack.c.l.b16 %v418
    %v712 = vunpack.c.l.b16 %v419
    %v713 = vunpack.c.l.b16 %v420
    %v714 = vunpack.c.l.b16 %v421
    %v715 = vunpack.c.l.b16 %v422
    %v716 = vunpack.c.l.b16 %v423
    %v717 = vunpack.c.l.b16 %v424
    %v718 = vunpack.c.l.b16 %v425
    %v719 = vunpack.c.l.b16 %v426
    %v720 = vunpack.c.l.b16 %v427
    %v721 = vunpack.c.l.b16 %v428
    %v722 = vunpack.c.l.b16 %v429
    %v723 = vunpack.c.l.b16 %v430
    %v724 = vunpack.c.l.b16 %v431
    %v725 = vunpack.c.l.b16 %v432
    %v726 = vunpack.c.l.b16 %v433
    %v727 = vunpack.c.l.b16 %v434
    %v728 = vunpack.c.l.b16 %v435
    %v729 = vunpack.c.l.b16 %v436
    %v730 = vunpack.c.l.b16 %v437
    %v731 = vunpack.c.l.b16 %v438
    %v732 = vunpack.c.l.b16 %v439
    %v733 = vunpack.c.l.b16 %v440
    %v734 = vunpack.c.l.b16 %v441
    %v735 = vunpack.c.l.b16 %v442
    %v736 = vunpack.c.l.b16 %v443
    %v737 = vunpack.c.l.b16 %v444
    %v738 = vunpack.c.l.b16 %v445
    %v739 = vunpack.c.l.b16 %v446
    %v740 = vunpack.c.l.b16 %v447
    %v741 = vunpack.c.l.b16 %v448
    %v742 = vunpack.c.l.b16 %v449
    %v743 = vunpack.c.l.b16 %v450
    %v744 = vunpack.c.l.b16 %v451
    %v745 = vunpack.c.l.b16 %v452
    %v746 = vunpack.c.l.b16 %v453
    %v747 = vunpack.c.l.b16 %v454
    %v748 = vunpack.c.l.b16 %v455
    %v749 = vunpack.c.l.b16 %v456
    %v750 = vunpack.c.l.b16 %v457
    %v751 = vunpack.c.l.b16 %v458
    %v752 = vunpack.c.l.b16 %v459
    %v753 = vunpack.c.l.b16 %v460
    %v754 = vunpack.c.l.b16 %v461
    %v755 = vunpack.c.l.b16 %v462
    %v756 = vunpack.c.l.b16 %v463
    %v757 = vunpack.c.l.b16 %v464
    %v758 = vunpack.c.l.b16 %v465
    %v759 = vunpack.c.l.b16 %v466
    %v760 = vunpack.c.l.b16 %v467
    %v761 = vunpack.c.l.b16 %v468
    %v762 = vunpack.c.l.b16 %v469
    %v763 = vunpack.c.l.b16 %v470
    %v764 = vunpack.c.l.b16 %v471
    %v765 = vunpack.c.l.b16 %v472
    %v766 = vunpack.c.l.b16 %v473
    %v767 = vunpack.c.l.b16 %v474
    %v768 = vunpack.c.l.b16 %v475
    %v769 = vunpack.c.l.b16 %v476
    %v770 = vunpack.c.l.b16 %v477
    %v771 = vunpack.c.l.b16 %v478
    %v772 = vunpack.c.l.b16 %v479
    %v773 = vunpack.c.l.b16 %v480
    %v774 = vunpack.c.l.b16 %v481
    %v775 = vunpack.c.l.b16 %v482
    %v776 = vpack.c.b16 %v633, %v632
    %v777 = vpack.c.b16 %v635, %v634
    %v778 = vpack.c.b16 %v637, %v636
    %v779 = vpack.c.b16 %v639, %v638
    %v780 = vpack.c.b16 %v641, %v640
    %v781 = vpack.c.b16 %v643, %v642
    %v782 = vpack.c.b16 %v645, %v644
    %v783 = vpack.c.b16 %v647, %v646
    %v784 = vpack.c.b16 %v649, %v648
    %v785 = vpack.c.b16 %v651, %v650
    %v786 = vpack.c.b16 %v653, %v652
    %v787 = vpack.c.b16 %v655, %v654
    %v788 = vpack.c.b16 %v657, %v656
    %v789 = vpack.c.b16 %v659, %v658
    %v790 = vpack.c.b16 %v661, %v660
    %v791 = vpack.c.b16 %v663, %v662
    %v792 = vpack.c.b16 %v665, %v664
    %v793 = vpack.c.b16 %v667, %v666
    %v794 = vpack.c.b16 %v669, %v668
    %v795 = vpack.c.b16 %v671, %v670
    %v796 = vpack.c.b16 %v673, %v672
    %v797 = vpack.c.b16 %v675, %v674
    %v798 = vpack.c.b16 %v677, %v676
    %v799 = vpack.c.b16 %v679, %v678
    %v800 = vpack.c.b16 %v681, %v680
    %v801 = vpack.c.b16 %v683, %v682
    %v802 = vpack.c.b16 %v685, %v684
    %v803 = vpack.c.b16 %v687, %v686
    %v804 = vpack.c.b16 %v689, %v688
    %v805 = vpack.c.b16 %v691, %v690
    %v806 = vpack.c.b16 %v693, %v692
    %v807 = vpack.c.b16 %v695, %v694
    %v808 = vpack.c.b16 %v697, %v696
    %v809 = vpack.c.b16 %v699, %v698
    %v810 = vpack.c.b16 %v701, %v700
    %v811 = vpack.c.b16 %v703, %v702
    %v812 = vpack.c.b16 %v705, %v704
    %v813 = vpack.c.b16 %v707, %v706
    %v814 = vpack.c.b16 %v709, %v708
    %v815 = vpack.c.b16 %v711, %v710
    %v816 = vpack.c.b16 %v713, %v712
    %v817 = vpack.c.b16 %v715, %v714
    %v818 = vpack.c.b16 %v717, %v716
    %v819 = vpack.c.b16 %v719, %v718
    %v820 = vpack.c.b16 %v721, %v720
    %v821 = vpack.c.b16 %v723, %v722
    %v822 = vpack.c.b16 %v725, %v724
    %v823 = vpack.c.b16 %v727, %v726
    %v824 = vpack.c.b16 %v729, %v728
    %v825 = vpack.c.b16 %v731, %v730
    %v826 = vpack.c.b16 %v733, %v732
    %v827 = vpack.c.b16 %v735, %v734
    %v828 = vpack.c.b16 %v737, %v736
    %v829 = vpack.c.b16 %v739, %v738
    %v830 = vpack.c.b16 %v741, %v740
    %v831 = vpack.c.b16 %v743, %v742
    %v832 = vpack.c.b16 %v745, %v744
    %v833 = vpack.c.b16 %v747, %v746
    %v834 = vpack.c.b16 %v749, %v748
    %v835 = vpack.c.b16 %v751, %v750
    %v836 = vpack.c.b16 %v753, %v752
    %v837 = vpack.c.b16 %v755, %v754
    %v838 = vpack.c.b16 %v757, %v756
    %v839 = vpack.c.b16 %v759, %v758
    %v840 = vpack.c.b16 %v761, %v760
    %v841 = vpack.c.b16 %v763, %v762
    %v842 = vpack.c.b16 %v765, %v764
    %v843 = vpack.c.b16 %v767, %v766
    %v844 = vpack.c.b16 %v769, %v768
    %v845 = vpack.c.b16 %v771, %v770
    %v846 = vpack.c.b16 %v773, %v772
    %v847 = vpack.c.b16 %v775, %v774
    %920 = vmatprep.subr.bf16.mxu0 0
    %921 = vmatpush1.bf16.msra.mxu0 %v776
    %922 = vmatprep.subr.bf16.mxu0 0
    %923 = vmatpush1.bf16.msra.mxu0 %v777
    %924 = vmatprep.subr.bf16.mxu0 0
    %925 = vmatpush1.bf16.msra.mxu0 %v778
    %926 = vmatprep.subr.bf16.mxu0 0
    %927 = vmatpush1.bf16.msra.mxu0 %v779
    %928 = vmatprep.subr.bf16.mxu0 0
    %929 = vmatpush1.bf16.msra.mxu0 %v780
    %930 = vmatprep.subr.bf16.mxu0 0
    %931 = vmatpush1.bf16.msra.mxu0 %v781
    %932 = vmatprep.subr.bf16.mxu0 0
    %933 = vmatpush1.bf16.msra.mxu0 %v782
    %934 = vmatprep.subr.bf16.mxu0 0
    %935 = vmatpush1.bf16.msra.mxu0 %v783
    %936 = vmatprep.subr.bf16.mxu0 0
    %937 = vmatpush1.bf16.msra.mxu0 %v784
    %938 = vmatprep.subr.bf16.mxu0 0
    %939 = vmatpush1.bf16.msra.mxu0 %v785
    %940 = vmatprep.subr.bf16.mxu0 0
    %941 = vmatpush1.bf16.msra.mxu0 %v786
    %942 = vmatprep.subr.bf16.mxu0 0
    %943 = vmatpush1.bf16.msra.mxu0 %v787
    %944 = vmatprep.subr.bf16.mxu0 0
    %945 = vmatpush1.bf16.msra.mxu0 %v788
    %946 = vmatprep.subr.bf16.mxu0 0
    %947 = vmatpush1.bf16.msra.mxu0 %v789
    %948 = vmatprep.subr.bf16.mxu0 0
    %949 = vmatpush1.bf16.msra.mxu0 %v790
    %950 = vmatprep.subr.bf16.mxu0 0
    %951 = vmatpush1.bf16.msra.mxu0 %v791
    %952 = vmatprep.mubr.bf16.mxu0 %v322
    %953 = vmatmul.mubr.bf16.gmra.mrb[0].mxu0 %v321
    %v954 = vpop.f32.mrb[0].mxu0
    %v955 = vadd.f32 %v487, %v954
    %v956 = vpop.f32.mrb[0].mxu0
    %v957 = vpop.f32.mrb[0].mxu0
    %v958 = vadd.f32 %v487, %v957
    %v959 = vpop.f32.mrb[0].mxu0
    %960 = vmatprep.mubr.bf16.mxu0 %v331
    %961 = vmatmul.mubr.bf16.gmra.mrb[0].mxu0 %v330
    %v962 = vpop.f32.mrb[0].mxu0
    %v963 = vadd.f32 %v487, %v962
    %v964 = vpop.f32.mrb[0].mxu0
    %v965 = vpop.f32.mrb[0].mxu0
    %v966 = vadd.f32 %v487, %v965
    %v967 = vpop.f32.mrb[0].mxu0
    %968 = vdwg.mxu0
    %969 = vmatprep.subr.bf16.mxu0 0
    %970 = vmatpush1.bf16.msra.mxu0 %v792
    %971 = vmatprep.subr.bf16.mxu0 0
    %972 = vmatpush1.bf16.msra.mxu0 %v793
    %973 = vmatprep.subr.bf16.mxu0 0
    %974 = vmatpush1.bf16.msra.mxu0 %v794
    %975 = vmatprep.subr.bf16.mxu0 0
    %976 = vmatpush1.bf16.msra.mxu0 %v795
    %977 = vmatprep.subr.bf16.mxu0 0
    %978 = vmatpush1.bf16.msra.mxu0 %v796
    %979 = vmatprep.subr.bf16.mxu0 0
    %980 = vmatpush1.bf16.msra.mxu0 %v797
    %981 = vmatprep.subr.bf16.mxu0 0
    %982 = vmatpush1.bf16.msra.mxu0 %v798
    %983 = vmatprep.subr.bf16.mxu0 0
    %984 = vmatpush1.bf16.msra.mxu0 %v799
    %985 = vmatprep.subr.bf16.mxu0 0
    %986 = vmatpush1.bf16.msra.mxu0 %v800
    %987 = vmatprep.subr.bf16.mxu0 0
    %988 = vmatpush1.bf16.msra.mxu0 %v801
    %989 = vmatprep.subr.bf16.mxu0 0
    %990 = vmatpush1.bf16.msra.mxu0 %v802
    %991 = vmatprep.subr.bf16.mxu0 0
    %992 = vmatpush1.bf16.msra.mxu0 %v803
    %993 = vmatprep.subr.bf16.mxu0 0
    %994 = vmatpush1.bf16.msra.mxu0 %v804
    %995 = vmatprep.subr.bf16.mxu0 0
    %996 = vmatpush1.bf16.msra.mxu0 %v805
    %997 = vmatprep.subr.bf16.mxu0 0
    %998 = vmatpush1.bf16.msra.mxu0 %v806
    %999 = vmatprep.subr.bf16.mxu0 0
    %1000 = vmatpush1.bf16.msra.mxu0 %v807
    %1001 = vmatprep.mubr.bf16.mxu0 %v324
    %1002 = vmatmul.mubr.bf16.gmra.mrb[0].mxu0 %v323
    %v1003 = vpop.f32.mrb[0].mxu0
    %v1004 = vadd.f32 %v955, %v1003
    %v1005 = vpop.f32.mrb[0].mxu0
    %v1006 = vpop.f32.mrb[0].mxu0
    %v1007 = vadd.f32 %v958, %v1006
    %v1008 = vpop.f32.mrb[0].mxu0
    %1009 = vmatprep.mubr.bf16.mxu0 %v333
    %1010 = vmatmul.mubr.bf16.gmra.mrb[0].mxu0 %v332
    %v1011 = vpop.f32.mrb[0].mxu0
    %v1012 = vadd.f32 %v963, %v1011
    %v1013 = vpop.f32.mrb[0].mxu0
    %v1014 = vpop.f32.mrb[0].mxu0
    %v1015 = vadd.f32 %v966, %v1014
    %v1016 = vpop.f32.mrb[0].mxu0
    %1017 = vdwg.mxu0
    %1018 = vmatprep.subr.bf16.mxu0 0
    %1019 = vmatpush1.bf16.msra.mxu0 %v808
    %1020 = vmatprep.subr.bf16.mxu0 0
    %1021 = vmatpush1.bf16.msra.mxu0 %v809
    %1022 = vmatprep.subr.bf16.mxu0 0
    %1023 = vmatpush1.bf16.msra.mxu0 %v810
    %1024 = vmatprep.subr.bf16.mxu0 0
    %1025 = vmatpush1.bf16.msra.mxu0 %v811
    %1026 = vmatprep.subr.bf16.mxu0 0
    %1027 = vmatpush1.bf16.msra.mxu0 %v812
    %1028 = vmatprep.subr.bf16.mxu0 0
    %1029 = vmatpush1.bf16.msra.mxu0 %v813
    %1030 = vmatprep.subr.bf16.mxu0 0
    %1031 = vmatpush1.bf16.msra.mxu0 %v814
    %1032 = vmatprep.subr.bf16.mxu0 0
    %1033 = vmatpush1.bf16.msra.mxu0 %v815
    %1034 = vmatprep.subr.bf16.mxu0 0
    %1035 = vmatpush1.bf16.msra.mxu0 %v816
    %1036 = vmatprep.subr.bf16.mxu0 0
    %1037 = vmatpush1.bf16.msra.mxu0 %v817
    %1038 = vmatprep.subr.bf16.mxu0 0
    %1039 = vmatpush1.bf16.msra.mxu0 %v818
    %1040 = vmatprep.subr.bf16.mxu0 0
    %1041 = vmatpush1.bf16.msra.mxu0 %v819
    %1042 = vmatprep.subr.bf16.mxu0 0
    %1043 = vmatpush1.bf16.msra.mxu0 %v820
    %1044 = vmatprep.subr.bf16.mxu0 0
    %1045 = vmatpush1.bf16.msra.mxu0 %v821
    %1046 = vmatprep.subr.bf16.mxu0 0
    %1047 = vmatpush1.bf16.msra.mxu0 %v822
    %1048 = vmatprep.subr.bf16.mxu0 0
    %1049 = vmatpush1.bf16.msra.mxu0 %v823
    %1050 = vmatprep.mubr.bf16.mxu0 %v326
    %1051 = vmatmul.mubr.bf16.gmra.mrb[0].mxu0 %v325
    %v1052 = vpop.f32.mrb[0].mxu0
    %v1053 = vadd.f32 %v1004, %v1052
    %v1054 = vpop.f32.mrb[0].mxu0
    %v1055 = vpop.f32.mrb[0].mxu0
    %v1056 = vadd.f32 %v1007, %v1055
    %v1057 = vpop.f32.mrb[0].mxu0
    %1058 = vmatprep.mubr.bf16.mxu0 %v335
    %1059 = vmatmul.mubr.bf16.gmra.mrb[0].mxu0 %v334
    %v1060 = vpop.f32.mrb[0].mxu0
    %v1061 = vadd.f32 %v1012, %v1060
    %v1062 = vpop.f32.mrb[0].mxu0
    %v1063 = vpop.f32.mrb[0].mxu0
    %v1064 = vadd.f32 %v1015, %v1063
    %v1065 = vpop.f32.mrb[0].mxu0
    %1066 = vdwg.mxu0
    %1067 = vmatprep.subr.bf16.mxu0 0
    %1068 = vmatpush1.bf16.msra.mxu0 %v824
    %1069 = vmatprep.subr.bf16.mxu0 0
    %1070 = vmatpush1.bf16.msra.mxu0 %v825
    %1071 = vmatprep.subr.bf16.mxu0 0
    %1072 = vmatpush1.bf16.msra.mxu0 %v826
    %1073 = vmatprep.subr.bf16.mxu0 0
    %1074 = vmatpush1.bf16.msra.mxu0 %v827
    %1075 = vmatprep.subr.bf16.mxu0 0
    %1076 = vmatpush1.bf16.msra.mxu0 %v828
    %1077 = vmatprep.subr.bf16.mxu0 0
    %1078 = vmatpush1.bf16.msra.mxu0 %v829
    %1079 = vmatprep.subr.bf16.mxu0 0
    %1080 = vmatpush1.bf16.msra.mxu0 %v830
    %1081 = vmatprep.subr.bf16.mxu0 0
    %1082 = vmatpush1.bf16.msra.mxu0 %v831
    %1083 = vmatprep.subr.bf16.mxu0 0
    %1084 = vmatpush1.bf16.msra.mxu0 %v832
    %1085 = vmatprep.subr.bf16.mxu0 0
    %1086 = vmatpush1.bf16.msra.mxu0 %v833
    %1087 = vmatprep.subr.bf16.mxu0 0
    %1088 = vmatpush1.bf16.msra.mxu0 %v834
    %1089 = vmatprep.subr.bf16.mxu0 0
    %1090 = vmatpush1.bf16.msra.mxu0 %v835
    %1091 = vmatprep.subr.bf16.mxu0 0
    %1092 = vmatpush1.bf16.msra.mxu0 %v836
    %1093 = vmatprep.subr.bf16.mxu0 0
    %1094 = vmatpush1.bf16.msra.mxu0 %v837
    %1095 = vmatprep.subr.bf16.mxu0 0
    %1096 = vmatpush1.bf16.msra.mxu0 %v838
    %1097 = vmatprep.subr.bf16.mxu0 0
    %1098 = vmatpush1.bf16.msra.mxu0 %v839
    %1099 = vmatprep.mubr.bf16.mxu0 %v328
    %1100 = vmatmul.mubr.bf16.gmra.mrb[0].mxu0 %v327
    %v1101 = vpop.f32.mrb[0].mxu0
    %v1102 = vadd.f32 %v1053, %v1101
    %v1103 = vpop.f32.mrb[0].mxu0
    %v1104 = vpop.f32.mrb[0].mxu0
    %v1105 = vadd.f32 %v1056, %v1104
    %v1106 = vpop.f32.mrb[0].mxu0
    %1107 = vmatprep.mubr.bf16.mxu0 %v337
    %1108 = vmatmul.mubr.bf16.gmra.mrb[0].mxu0 %v336
    %v1109 = vpop.f32.mrb[0].mxu0
    %v1110 = vadd.f32 %v1061, %v1109
    %v1111 = vpop.f32.mrb[0].mxu0
    %v1112 = vpop.f32.mrb[0].mxu0
    %v1113 = vadd.f32 %v1064, %v1112
    %v1114 = vpop.f32.mrb[0].mxu0
    %1115 = vdwg.mxu0
    %1116 = vmatprep.subr.bf16.mxu0 0
    %1117 = vmatpush1.bf16.msra.mxu0 %v840
    %1118 = vmatprep.subr.bf16.mxu0 0
    %1119 = vmatpush1.bf16.msra.mxu0 %v841
    %1120 = vmatprep.subr.bf16.mxu0 0
    %1121 = vmatpush1.bf16.msra.mxu0 %v842
    %1122 = vmatprep.subr.bf16.mxu0 0
    %1123 = vmatpush1.bf16.msra.mxu0 %v843
    %1124 = vmatprep.subr.bf16.mxu0 0
    %1125 = vmatpush1.bf16.msra.mxu0 %v844
    %1126 = vmatprep.subr.bf16.mxu0 0
    %1127 = vmatpush1.bf16.msra.mxu0 %v845
    %1128 = vmatprep.subr.bf16.mxu0 0
    %1129 = vmatpush1.bf16.msra.mxu0 %v846
    %1130 = vmatprep.subr.bf16.mxu0 0
    %1131 = vmatpush1.bf16.msra.mxu0 %v847
    %1132 = vmatprep.subr.bf16.mxu0 0
    %1133 = vmatpush1.bf16.msra.mxu0 0
    %1134 = vmatprep.subr.bf16.mxu0 0
    %1135 = vmatpush1.bf16.msra.mxu0 0
    %1136 = vmatprep.subr.bf16.mxu0 0
    %1137 = vmatpush1.bf16.msra.mxu0 0
    %1138 = vmatprep.subr.bf16.mxu0 0
    %1139 = vmatpush1.bf16.msra.mxu0 0
    %1140 = vmatprep.subr.bf16.mxu0 0
    %1141 = vmatpush1.bf16.msra.mxu0 0
    %1142 = vmatprep.subr.bf16.mxu0 0
    %1143 = vmatpush1.bf16.msra.mxu0 0
    %1144 = vmatprep.subr.bf16.mxu0 0
    %1145 = vmatpush1.bf16.msra.mxu0 0
    %1146 = vmatprep.subr.bf16.mxu0 0
    %1147 = vmatpush1.bf16.msra.mxu0 0
    %1148 = vmatprep.mubr.bf16.mxu0 0
    %1149 = vmatmul.mubr.bf16.gmra.mrb[0].mxu0 %v329
    %v1150 = vpop.f32.mrb[0].mxu0
    %v1151 = vadd.f32 %v1102, %v1150
    %v1152 = vpop.f32.mrb[0].mxu0
    %v1153 = vpop.f32.mrb[0].mxu0
    %v1154 = vadd.f32 %v1105, %v1153
    %v1155 = vpop.f32.mrb[0].mxu0
    %1156 = vmatprep.mubr.bf16.mxu0 0
    %1157 = vmatmul.mubr.bf16.gmra.mrb[0].mxu0 %v338
    %v1158 = vpop.f32.mrb[0].mxu0
    %v1159 = vadd.f32 %v1110, %v1158
    %v1160 = vpop.f32.mrb[0].mxu0
    %v1161 = vpop.f32.mrb[0].mxu0
    %v1162 = vadd.f32 %v1113, %v1161
    %v1163 = vpop.f32.mrb[0].mxu0
    %1164 = vdwg.mxu0
    %v1165 = vmax.f32 %v1151, 0.0
    %v1166 = vmax.f32 %v1154, 0.0
    %v1167 = vmax.f32 %v1159, 0.0
    %v1168 = vmax.f32 %v1162, 0.0
    %v1173 = vrot.slane %v1165, 7
    %v1174 = vrot.slane %v1166, 7
    %v1175 = vsel %vm129, %v1173, %v1174
    %v1176 = vrot.slane %v1167, 7
    %v1177 = vsel %vm129, %v1174, %v1176
    %v1178 = vrot.slane %v1168, 7
    %v1179 = vsel %vm129, %v1176, %v1178
    %v1184 = vsel %vm129, 0.0, %v1173
    %v1185 = vsel %vm146, %v1184, 0.0
    %v1186 = vsel %vm147, %v1175, 0.0
    %v1187 = vsel %vm148, %v1177, 0.0
    %v1188 = vsel %vm149, %v1179, 0.0
    %v1189 = vrot.slane %v1165, 1
    %v1190 = vrot.slane %v1166, 1
    %v1191 = vsel %vm154, %v1189, %v1190
    %v1192 = vrot.slane %v1167, 1
    %v1193 = vsel %vm154, %v1190, %v1192
    %v1194 = vrot.slane %v1168, 1
    %v1195 = vsel %vm154, %v1192, %v1194
    %v1200 = vsel %vm154, %v1194, 0.0
    %v1201 = vsel %vm171, %v1191, 0.0
    %v1202 = vsel %vm172, %v1193, 0.0
    %v1203 = vsel %vm173, %v1195, 0.0
    %v1204 = vsel %vm174, %v1200, 0.0
    %1209 = vrot.lane.b32.xlu0 %v1185, 8
    %v1210 = vpop.permute.xlu0 %1209
    %1211 = vrot.lane.b32.xlu0 %v1186, 8
    %v1212 = vpop.permute.xlu0 %1211
    %1213 = vrot.lane.b32.xlu0 %v1187, 8
    %v1214 = vpop.permute.xlu0 %1213
    %1215 = vrot.lane.b32.xlu0 %v1188, 8
    %v1216 = vpop.permute.xlu0 %1215
    %v1221 = vsel %vm195, 0.0, %v1210
    %v1222 = vsel %vm195, 0.0, %v1212
    %v1223 = vsel %vm195, 0.0, %v1214
    %v1224 = vsel %vm195, 0.0, %v1216
    %1225 = vrot.lane.b32.xlu0 %v1185, 120
    %v1226 = vpop.permute.xlu0 %1225
    %1227 = vrot.lane.b32.xlu0 %v1186, 120
    %v1228 = vpop.permute.xlu0 %1227
    %1229 = vrot.lane.b32.xlu0 %v1187, 120
    %v1230 = vpop.permute.xlu0 %1229
    %1231 = vrot.lane.b32.xlu0 %v1188, 120
    %v1232 = vpop.permute.xlu0 %1231
    %v1237 = vsel %vm212, %v1226, 0.0
    %v1238 = vsel %vm212, %v1228, 0.0
    %v1239 = vsel %vm212, %v1230, 0.0
    %v1240 = vsel %vm212, %v1232, 0.0
    %v1241 = vpack.c.bf16 %v1222, %v1221
    %v1242 = vpack.c.bf16 %v1224, %v1223
    %1243 = vst [vmem:[#allocation2] sm:$0xff] %v1241
    %1244 = vst [vmem:[#allocation2 + $0x48] sm:$0xff] %v1242
    %v1245 = vpack.c.bf16 %v1186, %v1185
    %v1246 = vpack.c.bf16 %v1188, %v1187
    %1247 = vst [vmem:[#allocation2 + $0x8] sm:$0xff] %v1245
    %1248 = vst [vmem:[#allocation2 + $0x50] sm:$0xff] %v1246
    %v1249 = vpack.c.bf16 %v1238, %v1237
    %v1250 = vpack.c.bf16 %v1240, %v1239
    %1251 = vst [vmem:[#allocation2 + $0x10] sm:$0xff] %v1249
    %1252 = vst [vmem:[#allocation2 + $0x58] sm:$0xff] %v1250
    %1253 = vrot.lane.b32.xlu0 %v1165, 8
    %v1254 = vpop.permute.xlu0 %1253
    %1255 = vrot.lane.b32.xlu0 %v1166, 8
    %v1256 = vpop.permute.xlu0 %1255
    %1257 = vrot.lane.b32.xlu0 %v1167, 8
    %v1258 = vpop.permute.xlu0 %1257
    %1259 = vrot.lane.b32.xlu0 %v1168, 8
    %v1260 = vpop.permute.xlu0 %1259
    %v1265 = vsel %vm195, 0.0, %v1254
    %v1266 = vsel %vm195, 0.0, %v1256
    %v1267 = vsel %vm195, 0.0, %v1258
    %v1268 = vsel %vm195, 0.0, %v1260
    %1269 = vrot.lane.b32.xlu0 %v1165, 120
    %v1270 = vpop.permute.xlu0 %1269
    %1271 = vrot.lane.b32.xlu0 %v1166, 120
    %v1272 = vpop.permute.xlu0 %1271
    %1273 = vrot.lane.b32.xlu0 %v1167, 120
    %v1274 = vpop.permute.xlu0 %1273
    %1275 = vrot.lane.b32.xlu0 %v1168, 120
    %v1276 = vpop.permute.xlu0 %1275
    %v1281 = vsel %vm212, %v1270, 0.0
    %v1282 = vsel %vm212, %v1272, 0.0
    %v1283 = vsel %vm212, %v1274, 0.0
    %v1284 = vsel %vm212, %v1276, 0.0
    %v1285 = vpack.c.bf16 %v1266, %v1265
    %v1286 = vpack.c.bf16 %v1268, %v1267
    %1287 = vst [vmem:[#allocation2 + $0x18] sm:$0xff] %v1285
    %1288 = vst [vmem:[#allocation2 + $0x60] sm:$0xff] %v1286
    %v1289 = vpack.c.bf16 %v1166, %v1165
    %v1290 = vpack.c.bf16 %v1168, %v1167
    %1291 = vst [vmem:[#allocation2 + $0x20] sm:$0xff] %v1289
    %1292 = vst [vmem:[#allocation2 + $0x68] sm:$0xff] %v1290
    %v1293 = vpack.c.bf16 %v1282, %v1281
    %v1294 = vpack.c.bf16 %v1284, %v1283
    %1295 = vst [vmem:[#allocation2 + $0x28] sm:$0xff] %v1293
    %1296 = vst [vmem:[#allocation2 + $0x70] sm:$0xff] %v1294
    %1301 = vrot.lane.b32.xlu0 %v1201, 8
    %v1302 = vpop.permute.xlu0 %1301
    %1303 = vrot.lane.b32.xlu0 %v1202, 8
    %v1304 = vpop.permute.xlu0 %1303
    %1305 = vrot.lane.b32.xlu0 %v1203, 8
    %v1306 = vpop.permute.xlu0 %1305
    %1307 = vrot.lane.b32.xlu0 %v1204, 8
    %v1308 = vpop.permute.xlu0 %1307
    %v1313 = vsel %vm195, 0.0, %v1302
    %v1314 = vsel %vm195, 0.0, %v1304
    %v1315 = vsel %vm195, 0.0, %v1306
    %v1316 = vsel %vm195, 0.0, %v1308
    %1317 = vrot.lane.b32.xlu0 %v1201, 120
    %v1318 = vpop.permute.xlu0 %1317
    %1319 = vrot.lane.b32.xlu0 %v1202, 120
    %v1320 = vpop.permute.xlu0 %1319
    %1321 = vrot.lane.b32.xlu0 %v1203, 120
    %v1322 = vpop.permute.xlu0 %1321
    %1323 = vrot.lane.b32.xlu0 %v1204, 120
    %v1324 = vpop.permute.xlu0 %1323
    %v1329 = vsel %vm212, %v1318, 0.0
    %v1330 = vsel %vm212, %v1320, 0.0
    %v1331 = vsel %vm212, %v1322, 0.0
    %v1332 = vsel %vm212, %v1324, 0.0
    %v1333 = vpack.c.bf16 %v1314, %v1313
    %v1334 = vpack.c.bf16 %v1316, %v1315
    %1335 = vst [vmem:[#allocation2 + $0x30] sm:$0xff] %v1333
    %1336 = vst [vmem:[#allocation2 + $0x78] sm:$0xff] %v1334
    %v1337 = vpack.c.bf16 %v1202, %v1201
    %v1338 = vpack.c.bf16 %v1204, %v1203
    %1339 = vst [vmem:[#allocation2 + $0x38] sm:$0xff] %v1337
    %1340 = vst [vmem:[#allocation2 + $0x80] sm:$0xff] %v1338
    %v1341 = vpack.c.bf16 %v1330, %v1329
    %v1342 = vpack.c.bf16 %v1332, %v1331
    %1343 = vst [vmem:[#allocation2 + $0x40] sm:$0xff] %v1341
    %1344 = vst [vmem:[#allocation2 + $0x88] sm:$0xff] %v1342
    %v1345 = vld [vmem:[#allocation2] sm:$0xff]
    %v1346 = vld [vmem:[#allocation2 + $0x8] sm:$0xff]
    %v1347 = vld [vmem:[#allocation2 + $0x10] sm:$0xff]
    %v1348 = vld [vmem:[#allocation2 + $0x18] sm:$0xff]
    %v1349 = vld [vmem:[#allocation2 + $0x20] sm:$0xff]
    %v1350 = vld [vmem:[#allocation2 + $0x28] sm:$0xff]
    %v1351 = vld [vmem:[#allocation2 + $0x30] sm:$0xff]
    %v1352 = vld [vmem:[#allocation2 + $0x38] sm:$0xff]
    %v1353 = vld [vmem:[#allocation2 + $0x40] sm:$0xff]
    %v1354 = vld [vmem:[#allocation2 + $0x48] sm:$0xff]
    %v1355 = vld [vmem:[#allocation2 + $0x50] sm:$0xff]
    %v1356 = vld [vmem:[#allocation2 + $0x58] sm:$0xff]
    %v1357 = vld [vmem:[#allocation2 + $0x60] sm:$0xff]
    %v1358 = vld [vmem:[#allocation2 + $0x68] sm:$0xff]
    %v1359 = vld [vmem:[#allocation2 + $0x70] sm:$0xff]
    %v1360 = vld [vmem:[#allocation2 + $0x78] sm:$0xff]
    %v1361 = vld [vmem:[#allocation2 + $0x80] sm:$0xff]
    %v1362 = vld [vmem:[#allocation2 + $0x88] sm:$0xff]
    %v1363 = vld [vmem:[#allocation8] sm:$0xf]
    %v1364 = vld [vmem:[#allocation8 + $0x4] sm:$0xf]
    %v1365 = vld [vmem:[#allocation8 + $0x8] sm:$0xf]
    %v1366 = vld [vmem:[#allocation8 + $0xc] sm:$0xf]
    %v1367 = vld [vmem:[#allocation8 + $0x10] sm:$0xf]
    %v1368 = vld [vmem:[#allocation8 + $0x14] sm:$0xf]
    %v1369 = vld [vmem:[#allocation8 + $0x18] sm:$0xf]
    %v1370 = vld [vmem:[#allocation8 + $0x1c] sm:$0xf]
    %v1371 = vld [vmem:[#allocation8 + $0x20] sm:$0xf]
    %v1372 = vld [vmem:[#allocation8 + $0x24] sm:$0xf]
    %v1373 = vld [vmem:[#allocation8 + $0x28] sm:$0xf]
    %v1374 = vld [vmem:[#allocation8 + $0x2c] sm:$0xf]
    %v1375 = vld [vmem:[#allocation8 + $0x30] sm:$0xf]
    %v1376 = vld [vmem:[#allocation8 + $0x34] sm:$0xf]
    %v1377 = vld [vmem:[#allocation8 + $0x38] sm:$0xf]
    %v1378 = vld [vmem:[#allocation8 + $0x3c] sm:$0xf]
    %v1379 = vld [vmem:[#allocation8 + $0x40] sm:$0xf]
    %v1380 = vld [vmem:[#allocation8 + $0x44] sm:$0xf]
    %v1381 = vld [vmem:[#allocation8 + $0x48] sm:$0xf]
    %v1382 = vld [vmem:[#allocation8 + $0x4c] sm:$0xf]
    %v1383 = vld [vmem:[#allocation8 + $0x50] sm:$0xf]
    %v1384 = vld [vmem:[#allocation8 + $0x54] sm:$0xf]
    %v1385 = vld [vmem:[#allocation8 + $0x58] sm:$0xf]
    %v1386 = vld [vmem:[#allocation8 + $0x5c] sm:$0xf]
    %v1387 = vld [vmem:[#allocation8 + $0x60] sm:$0xf]
    %v1388 = vld [vmem:[#allocation8 + $0x64] sm:$0xf]
    %v1389 = vld [vmem:[#allocation8 + $0x68] sm:$0xf]
    %v1390 = vld [vmem:[#allocation8 + $0x6c] sm:$0xf]
    %v1391 = vld [vmem:[#allocation8 + $0x70] sm:$0xf]
    %v1392 = vld [vmem:[#allocation8 + $0x74] sm:$0xf]
    %v1393 = vld [vmem:[#allocation8 + $0x78] sm:$0xf]
    %v1394 = vld [vmem:[#allocation8 + $0x7c] sm:$0xf]
    %v1395 = vld [vmem:[#allocation8 + $0x80] sm:$0xf]
    %v1396 = vld [vmem:[#allocation8 + $0x84] sm:$0xf]
    %v1397 = vld [vmem:[#allocation8 + $0x88] sm:$0xf]
    %v1398 = vld [vmem:[#allocation8 + $0x8c] sm:$0xf]
    %v1399 = vld [vmem:[#allocation8 + $0x90] sm:$0xf]
    %v1400 = vld [vmem:[#allocation8 + $0x94] sm:$0xf]
    %v1401 = vld [vmem:[#allocation8 + $0x98] sm:$0xf]
    %v1402 = vld [vmem:[#allocation8 + $0x9c] sm:$0xf]
    %v1403 = vld [vmem:[#allocation8 + $0xa0] sm:$0xf]
    %v1404 = vld [vmem:[#allocation8 + $0xa4] sm:$0xf]
    %v1405 = vld [vmem:[#allocation8 + $0xa8] sm:$0xf]
    %v1406 = vld [vmem:[#allocation8 + $0xac] sm:$0xf]
    %v1407 = vld [vmem:[#allocation8 + $0xb0] sm:$0xf]
    %v1408 = vld [vmem:[#allocation8 + $0xb4] sm:$0xf]
    %v1409 = vld [vmem:[#allocation8 + $0xb8] sm:$0xf]
    %v1410 = vld [vmem:[#allocation8 + $0xbc] sm:$0xf]
    %v1411 = vld [vmem:[#allocation8 + $0xc0] sm:$0xf]
    %v1412 = vld [vmem:[#allocation8 + $0xc4] sm:$0xf]
    %v1413 = vld [vmem:[#allocation8 + $0xc8] sm:$0xf]
    %v1414 = vld [vmem:[#allocation8 + $0xcc] sm:$0xf]
    %v1415 = vld [vmem:[#allocation8 + $0xd0] sm:$0xf]
    %v1416 = vld [vmem:[#allocation8 + $0xd4] sm:$0xf]
    %v1417 = vld [vmem:[#allocation8 + $0xd8] sm:$0xf]
    %v1418 = vld [vmem:[#allocation8 + $0xdc] sm:$0xf]
    %v1419 = vld [vmem:[#allocation8 + $0xe0] sm:$0xf]
    %v1420 = vld [vmem:[#allocation8 + $0xe4] sm:$0xf]
    %v1421 = vld [vmem:[#allocation8 + $0xe8] sm:$0xf]
    %v1422 = vld [vmem:[#allocation8 + $0xec] sm:$0xf]
    %v1423 = vld [vmem:[#allocation8 + $0xf0] sm:$0xf]
    %v1424 = vld [vmem:[#allocation8 + $0xf4] sm:$0xf]
    %v1425 = vld [vmem:[#allocation8 + $0xf8] sm:$0xf]
    %v1426 = vld [vmem:[#allocation8 + $0xfc] sm:$0xf]
    %v1427 = vld [vmem:[#allocation8 + $0x100] sm:$0xf]
    %v1428 = vld [vmem:[#allocation8 + $0x104] sm:$0xf]
    %v1429 = vld [vmem:[#allocation8 + $0x108] sm:$0xf]
    %v1430 = vld [vmem:[#allocation8 + $0x10c] sm:$0xf]
    %v1431 = vld [vmem:[#allocation8 + $0x110] sm:$0xf]
    %v1432 = vld [vmem:[#allocation8 + $0x114] sm:$0xf]
    %v1433 = vld [vmem:[#allocation8 + $0x118] sm:$0xf]
    %v1434 = vld [vmem:[#allocation8 + $0x11c] sm:$0xf]
    %v1435 = vld [vmem:[#allocation8 + $0x120] sm:$0xf]
    %v1436 = vld [vmem:[#allocation8 + $0x124] sm:$0xf]
    %v1437 = vld [vmem:[#allocation8 + $0x128] sm:$0xf]
    %v1438 = vld [vmem:[#allocation8 + $0x12c] sm:$0xf]
    %v1439 = vld [vmem:[#allocation8 + $0x130] sm:$0xf]
    %v1440 = vld [vmem:[#allocation8 + $0x134] sm:$0xf]
    %v1441 = vld [vmem:[#allocation8 + $0x138] sm:$0xf]
    %v1442 = vld [vmem:[#allocation8 + $0x13c] sm:$0xf]
    %v1443 = vld [vmem:[#allocation8 + $0x140] sm:$0xf]
    %v1444 = vld [vmem:[#allocation8 + $0x144] sm:$0xf]
    %v1445 = vld [vmem:[#allocation8 + $0x148] sm:$0xf]
    %v1446 = vld [vmem:[#allocation8 + $0x14c] sm:$0xf]
    %v1447 = vld [vmem:[#allocation8 + $0x150] sm:$0xf]
    %v1448 = vld [vmem:[#allocation8 + $0x154] sm:$0xf]
    %v1449 = vld [vmem:[#allocation8 + $0x158] sm:$0xf]
    %v1450 = vld [vmem:[#allocation8 + $0x15c] sm:$0xf]
    %v1451 = vld [vmem:[#allocation8 + $0x160] sm:$0xf]
    %v1452 = vld [vmem:[#allocation8 + $0x164] sm:$0xf]
    %v1453 = vld [vmem:[#allocation8 + $0x168] sm:$0xf]
    %v1454 = vld [vmem:[#allocation8 + $0x16c] sm:$0xf]
    %v1455 = vld [vmem:[#allocation8 + $0x170] sm:$0xf]
    %v1456 = vld [vmem:[#allocation8 + $0x174] sm:$0xf]
    %v1457 = vld [vmem:[#allocation8 + $0x178] sm:$0xf]
    %v1458 = vld [vmem:[#allocation8 + $0x17c] sm:$0xf]
    %v1459 = vld [vmem:[#allocation8 + $0x180] sm:$0xf]
    %v1460 = vld [vmem:[#allocation8 + $0x184] sm:$0xf]
    %v1461 = vld [vmem:[#allocation8 + $0x188] sm:$0xf]
    %v1462 = vld [vmem:[#allocation8 + $0x18c] sm:$0xf]
    %v1463 = vld [vmem:[#allocation8 + $0x190] sm:$0xf]
    %v1464 = vld [vmem:[#allocation8 + $0x194] sm:$0xf]
    %v1465 = vld [vmem:[#allocation8 + $0x198] sm:$0xf]
    %v1466 = vld [vmem:[#allocation8 + $0x19c] sm:$0xf]
    %v1467 = vld [vmem:[#allocation8 + $0x1a0] sm:$0xf]
    %v1468 = vld [vmem:[#allocation8 + $0x1a4] sm:$0xf]
    %v1469 = vld [vmem:[#allocation8 + $0x1a8] sm:$0xf]
    %v1470 = vld [vmem:[#allocation8 + $0x1ac] sm:$0xf]
    %v1471 = vld [vmem:[#allocation8 + $0x1b0] sm:$0xf]
    %v1472 = vld [vmem:[#allocation8 + $0x1b4] sm:$0xf]
    %v1473 = vld [vmem:[#allocation8 + $0x1b8] sm:$0xf]
    %v1474 = vld [vmem:[#allocation8 + $0x1bc] sm:$0xf]
    %v1475 = vld [vmem:[#allocation8 + $0x1c0] sm:$0xf]
    %v1476 = vld [vmem:[#allocation8 + $0x1c4] sm:$0xf]
    %v1477 = vld [vmem:[#allocation8 + $0x1c8] sm:$0xf]
    %v1478 = vld [vmem:[#allocation8 + $0x1cc] sm:$0xf]
    %v1479 = vld [vmem:[#allocation8 + $0x1d0] sm:$0xf]
    %v1480 = vld [vmem:[#allocation8 + $0x1d4] sm:$0xf]
    %v1481 = vld [vmem:[#allocation8 + $0x1d8] sm:$0xf]
    %v1482 = vld [vmem:[#allocation8 + $0x1dc] sm:$0xf]
    %v1483 = vld [vmem:[#allocation8 + $0x1e0] sm:$0xf]
    %v1484 = vld [vmem:[#allocation8 + $0x1e4] sm:$0xf]
    %v1485 = vld [vmem:[#allocation8 + $0x1e8] sm:$0xf]
    %v1486 = vld [vmem:[#allocation8 + $0x1ec] sm:$0xf]
    %v1487 = vld [vmem:[#allocation8 + $0x1f0] sm:$0xf]
    %v1488 = vld [vmem:[#allocation8 + $0x1f4] sm:$0xf]
    %v1489 = vld [vmem:[#allocation8 + $0x1f8] sm:$0xf]
    %v1490 = vld [vmem:[#allocation8 + $0x1fc] sm:$0xf]
    %v1491 = vld [vmem:[#allocation8 + $0x200] sm:$0xf]
    %v1492 = vld [vmem:[#allocation8 + $0x204] sm:$0xf]
    %v1493 = vld [vmem:[#allocation8 + $0x208] sm:$0xf]
    %v1494 = vld [vmem:[#allocation8 + $0x20c] sm:$0xf]
    %v1495 = vld [vmem:[#allocation8 + $0x210] sm:$0xf]
    %v1496 = vld [vmem:[#allocation8 + $0x214] sm:$0xf]
    %v1497 = vld [vmem:[#allocation8 + $0x218] sm:$0xf]
    %v1498 = vld [vmem:[#allocation8 + $0x21c] sm:$0xf]
    %v1499 = vld [vmem:[#allocation8 + $0x220] sm:$0xf]
    %v1500 = vld [vmem:[#allocation8 + $0x224] sm:$0xf]
    %v1501 = vld [vmem:[#allocation8 + $0x228] sm:$0xf]
    %v1502 = vld [vmem:[#allocation8 + $0x22c] sm:$0xf]
    %v1503 = vld [vmem:[#allocation8 + $0x230] sm:$0xf]
    %v1504 = vld [vmem:[#allocation8 + $0x234] sm:$0xf]
    %v1505 = vld [vmem:[#allocation8 + $0x238] sm:$0xf]
    %v1506 = vld [vmem:[#allocation8 + $0x23c] sm:$0xf]
    %v1507 = vld [vmem:[%s3 + $0x1] sm:$0x1]
    %v1508 = vlaneseq
    %v1509 = vshrl.u32 %v1508, 7
    %v1510 = vsub.s32 0, %v1509
    %v1511 = vrot.slane %v1507, %v1510
    %v1656 = vunpack.c.l.b16 %v1363
    %v1657 = vunpack.c.l.b16 %v1364
    %v1658 = vunpack.c.l.b16 %v1365
    %v1659 = vunpack.c.l.b16 %v1366
    %v1660 = vunpack.c.l.b16 %v1367
    %v1661 = vunpack.c.l.b16 %v1368
    %v1662 = vunpack.c.l.b16 %v1369
    %v1663 = vunpack.c.l.b16 %v1370
    %v1664 = vunpack.c.l.b16 %v1371
    %v1665 = vunpack.c.l.b16 %v1372
    %v1666 = vunpack.c.l.b16 %v1373
    %v1667 = vunpack.c.l.b16 %v1374
    %v1668 = vunpack.c.l.b16 %v1375
    %v1669 = vunpack.c.l.b16 %v1376
    %v1670 = vunpack.c.l.b16 %v1377
    %v1671 = vunpack.c.l.b16 %v1378
    %v1672 = vunpack.c.l.b16 %v1379
    %v1673 = vunpack.c.l.b16 %v1380
    %v1674 = vunpack.c.l.b16 %v1381
    %v1675 = vunpack.c.l.b16 %v1382
    %v1676 = vunpack.c.l.b16 %v1383
    %v1677 = vunpack.c.l.b16 %v1384
    %v1678 = vunpack.c.l.b16 %v1385
    %v1679 = vunpack.c.l.b16 %v1386
    %v1680 = vunpack.c.l.b16 %v1387
    %v1681 = vunpack.c.l.b16 %v1388
    %v1682 = vunpack.c.l.b16 %v1389
    %v1683 = vunpack.c.l.b16 %v1390
    %v1684 = vunpack.c.l.b16 %v1391
    %v1685 = vunpack.c.l.b16 %v1392
    %v1686 = vunpack.c.l.b16 %v1393
    %v1687 = vunpack.c.l.b16 %v1394
    %v1688 = vunpack.c.l.b16 %v1395
    %v1689 = vunpack.c.l.b16 %v1396
    %v1690 = vunpack.c.l.b16 %v1397
    %v1691 = vunpack.c.l.b16 %v1398
    %v1692 = vunpack.c.l.b16 %v1399
    %v1693 = vunpack.c.l.b16 %v1400
    %v1694 = vunpack.c.l.b16 %v1401
    %v1695 = vunpack.c.l.b16 %v1402
    %v1696 = vunpack.c.l.b16 %v1403
    %v1697 = vunpack.c.l.b16 %v1404
    %v1698 = vunpack.c.l.b16 %v1405
    %v1699 = vunpack.c.l.b16 %v1406
    %v1700 = vunpack.c.l.b16 %v1407
    %v1701 = vunpack.c.l.b16 %v1408
    %v1702 = vunpack.c.l.b16 %v1409
    %v1703 = vunpack.c.l.b16 %v1410
    %v1704 = vunpack.c.l.b16 %v1411
    %v1705 = vunpack.c.l.b16 %v1412
    %v1706 = vunpack.c.l.b16 %v1413
    %v1707 = vunpack.c.l.b16 %v1414
    %v1708 = vunpack.c.l.b16 %v1415
    %v1709 = vunpack.c.l.b16 %v1416
    %v1710 = vunpack.c.l.b16 %v1417
    %v1711 = vunpack.c.l.b16 %v1418
    %v1712 = vunpack.c.l.b16 %v1419
    %v1713 = vunpack.c.l.b16 %v1420
    %v1714 = vunpack.c.l.b16 %v1421
    %v1715 = vunpack.c.l.b16 %v1422
    %v1716 = vunpack.c.l.b16 %v1423
    %v1717 = vunpack.c.l.b16 %v1424
    %v1718 = vunpack.c.l.b16 %v1425
    %v1719 = vunpack.c.l.b16 %v1426
    %v1720 = vunpack.c.l.b16 %v1427
    %v1721 = vunpack.c.l.b16 %v1428
    %v1722 = vunpack.c.l.b16 %v1429
    %v1723 = vunpack.c.l.b16 %v1430
    %v1724 = vunpack.c.l.b16 %v1431
    %v1725 = vunpack.c.l.b16 %v1432
    %v1726 = vunpack.c.l.b16 %v1433
    %v1727 = vunpack.c.l.b16 %v1434
    %v1728 = vunpack.c.l.b16 %v1435
    %v1729 = vunpack.c.l.b16 %v1436
    %v1730 = vunpack.c.l.b16 %v1437
    %v1731 = vunpack.c.l.b16 %v1438
    %v1732 = vunpack.c.l.b16 %v1439
    %v1733 = vunpack.c.l.b16 %v1440
    %v1734 = vunpack.c.l.b16 %v1441
    %v1735 = vunpack.c.l.b16 %v1442
    %v1736 = vunpack.c.l.b16 %v1443
    %v1737 = vunpack.c.l.b16 %v1444
    %v1738 = vunpack.c.l.b16 %v1445
    %v1739 = vunpack.c.l.b16 %v1446
    %v1740 = vunpack.c.l.b16 %v1447
    %v1741 = vunpack.c.l.b16 %v1448
    %v1742 = vunpack.c.l.b16 %v1449
    %v1743 = vunpack.c.l.b16 %v1450
    %v1744 = vunpack.c.l.b16 %v1451
    %v1745 = vunpack.c.l.b16 %v1452
    %v1746 = vunpack.c.l.b16 %v1453
    %v1747 = vunpack.c.l.b16 %v1454
    %v1748 = vunpack.c.l.b16 %v1455
    %v1749 = vunpack.c.l.b16 %v1456
    %v1750 = vunpack.c.l.b16 %v1457
    %v1751 = vunpack.c.l.b16 %v1458
    %v1752 = vunpack.c.l.b16 %v1459
    %v1753 = vunpack.c.l.b16 %v1460
    %v1754 = vunpack.c.l.b16 %v1461
    %v1755 = vunpack.c.l.b16 %v1462
    %v1756 = vunpack.c.l.b16 %v1463
    %v1757 = vunpack.c.l.b16 %v1464
    %v1758 = vunpack.c.l.b16 %v1465
    %v1759 = vunpack.c.l.b16 %v1466
    %v1760 = vunpack.c.l.b16 %v1467
    %v1761 = vunpack.c.l.b16 %v1468
    %v1762 = vunpack.c.l.b16 %v1469
    %v1763 = vunpack.c.l.b16 %v1470
    %v1764 = vunpack.c.l.b16 %v1471
    %v1765 = vunpack.c.l.b16 %v1472
    %v1766 = vunpack.c.l.b16 %v1473
    %v1767 = vunpack.c.l.b16 %v1474
    %v1768 = vunpack.c.l.b16 %v1475
    %v1769 = vunpack.c.l.b16 %v1476
    %v1770 = vunpack.c.l.b16 %v1477
    %v1771 = vunpack.c.l.b16 %v1478
    %v1772 = vunpack.c.l.b16 %v1479
    %v1773 = vunpack.c.l.b16 %v1480
    %v1774 = vunpack.c.l.b16 %v1481
    %v1775 = vunpack.c.l.b16 %v1482
    %v1776 = vunpack.c.l.b16 %v1483
    %v1777 = vunpack.c.l.b16 %v1484
    %v1778 = vunpack.c.l.b16 %v1485
    %v1779 = vunpack.c.l.b16 %v1486
    %v1780 = vunpack.c.l.b16 %v1487
    %v1781 = vunpack.c.l.b16 %v1488
    %v1782 = vunpack.c.l.b16 %v1489
    %v1783 = vunpack.c.l.b16 %v1490
    %v1784 = vunpack.c.l.b16 %v1491
    %v1785 = vunpack.c.l.b16 %v1492
    %v1786 = vunpack.c.l.b16 %v1493
    %v1787 = vunpack.c.l.b16 %v1494
    %v1788 = vunpack.c.l.b16 %v1495
    %v1789 = vunpack.c.l.b16 %v1496
    %v1790 = vunpack.c.l.b16 %v1497
    %v1791 = vunpack.c.l.b16 %v1498
    %v1792 = vunpack.c.l.b16 %v1499
    %v1793 = vunpack.c.l.b16 %v1500
    %v1794 = vunpack.c.l.b16 %v1501
    %v1795 = vunpack.c.l.b16 %v1502
    %v1796 = vunpack.c.l.b16 %v1503
    %v1797 = vunpack.c.l.b16 %v1504
    %v1798 = vunpack.c.l.b16 %v1505
    %v1799 = vunpack.c.l.b16 %v1506
    %v1800 = vpack.c.b16 %v1657, %v1656
    %v1801 = vpack.c.b16 %v1659, %v1658
    %v1802 = vpack.c.b16 %v1661, %v1660
    %v1803 = vpack.c.b16 %v1663, %v1662
    %v1804 = vpack.c.b16 %v1665, %v1664
    %v1805 = vpack.c.b16 %v1667, %v1666
    %v1806 = vpack.c.b16 %v1669, %v1668
    %v1807 = vpack.c.b16 %v1671, %v1670
    %v1808 = vpack.c.b16 %v1673, %v1672
    %v1809 = vpack.c.b16 %v1675, %v1674
    %v1810 = vpack.c.b16 %v1677, %v1676
    %v1811 = vpack.c.b16 %v1679, %v1678
    %v1812 = vpack.c.b16 %v1681, %v1680
    %v1813 = vpack.c.b16 %v1683, %v1682
    %v1814 = vpack.c.b16 %v1685, %v1684
    %v1815 = vpack.c.b16 %v1687, %v1686
    %v1816 = vpack.c.b16 %v1689, %v1688
    %v1817 = vpack.c.b16 %v1691, %v1690
    %v1818 = vpack.c.b16 %v1693, %v1692
    %v1819 = vpack.c.b16 %v1695, %v1694
    %v1820 = vpack.c.b16 %v1697, %v1696
    %v1821 = vpack.c.b16 %v1699, %v1698
    %v1822 = vpack.c.b16 %v1701, %v1700
    %v1823 = vpack.c.b16 %v1703, %v1702
    %v1824 = vpack.c.b16 %v1705, %v1704
    %v1825 = vpack.c.b16 %v1707, %v1706
    %v1826 = vpack.c.b16 %v1709, %v1708
    %v1827 = vpack.c.b16 %v1711, %v1710
    %v1828 = vpack.c.b16 %v1713, %v1712
    %v1829 = vpack.c.b16 %v1715, %v1714
    %v1830 = vpack.c.b16 %v1717, %v1716
    %v1831 = vpack.c.b16 %v1719, %v1718
    %v1832 = vpack.c.b16 %v1721, %v1720
    %v1833 = vpack.c.b16 %v1723, %v1722
    %v1834 = vpack.c.b16 %v1725, %v1724
    %v1835 = vpack.c.b16 %v1727, %v1726
    %v1836 = vpack.c.b16 %v1729, %v1728
    %v1837 = vpack.c.b16 %v1731, %v1730
    %v1838 = vpack.c.b16 %v1733, %v1732
    %v1839 = vpack.c.b16 %v1735, %v1734
    %v1840 = vpack.c.b16 %v1737, %v1736
    %v1841 = vpack.c.b16 %v1739, %v1738
    %v1842 = vpack.c.b16 %v1741, %v1740
    %v1843 = vpack.c.b16 %v1743, %v1742
    %v1844 = vpack.c.b16 %v1745, %v1744
    %v1845 = vpack.c.b16 %v1747, %v1746
    %v1846 = vpack.c.b16 %v1749, %v1748
    %v1847 = vpack.c.b16 %v1751, %v1750
    %v1848 = vpack.c.b16 %v1753, %v1752
    %v1849 = vpack.c.b16 %v1755, %v1754
    %v1850 = vpack.c.b16 %v1757, %v1756
    %v1851 = vpack.c.b16 %v1759, %v1758
    %v1852 = vpack.c.b16 %v1761, %v1760
    %v1853 = vpack.c.b16 %v1763, %v1762
    %v1854 = vpack.c.b16 %v1765, %v1764
    %v1855 = vpack.c.b16 %v1767, %v1766
    %v1856 = vpack.c.b16 %v1769, %v1768
    %v1857 = vpack.c.b16 %v1771, %v1770
    %v1858 = vpack.c.b16 %v1773, %v1772
    %v1859 = vpack.c.b16 %v1775, %v1774
    %v1860 = vpack.c.b16 %v1777, %v1776
    %v1861 = vpack.c.b16 %v1779, %v1778
    %v1862 = vpack.c.b16 %v1781, %v1780
    %v1863 = vpack.c.b16 %v1783, %v1782
    %v1864 = vpack.c.b16 %v1785, %v1784
    %v1865 = vpack.c.b16 %v1787, %v1786
    %v1866 = vpack.c.b16 %v1789, %v1788
    %v1867 = vpack.c.b16 %v1791, %v1790
    %v1868 = vpack.c.b16 %v1793, %v1792
    %v1869 = vpack.c.b16 %v1795, %v1794
    %v1870 = vpack.c.b16 %v1797, %v1796
    %v1871 = vpack.c.b16 %v1799, %v1798
    %1944 = vmatprep.subr.bf16.mxu0 0
    %1945 = vmatpush1.bf16.msra.mxu0 %v1800
    %1946 = vmatprep.subr.bf16.mxu0 0
    %1947 = vmatpush1.bf16.msra.mxu0 %v1801
    %1948 = vmatprep.subr.bf16.mxu0 0
    %1949 = vmatpush1.bf16.msra.mxu0 %v1802
    %1950 = vmatprep.subr.bf16.mxu0 0
    %1951 = vmatpush1.bf16.msra.mxu0 %v1803
    %1952 = vmatprep.subr.bf16.mxu0 0
    %1953 = vmatpush1.bf16.msra.mxu0 %v1804
    %1954 = vmatprep.subr.bf16.mxu0 0
    %1955 = vmatpush1.bf16.msra.mxu0 %v1805
    %1956 = vmatprep.subr.bf16.mxu0 0
    %1957 = vmatpush1.bf16.msra.mxu0 %v1806
    %1958 = vmatprep.subr.bf16.mxu0 0
    %1959 = vmatpush1.bf16.msra.mxu0 %v1807
    %1960 = vmatprep.subr.bf16.mxu0 0
    %1961 = vmatpush1.bf16.msra.mxu0 %v1808
    %1962 = vmatprep.subr.bf16.mxu0 0
    %1963 = vmatpush1.bf16.msra.mxu0 %v1809
    %1964 = vmatprep.subr.bf16.mxu0 0
    %1965 = vmatpush1.bf16.msra.mxu0 %v1810
    %1966 = vmatprep.subr.bf16.mxu0 0
    %1967 = vmatpush1.bf16.msra.mxu0 %v1811
    %1968 = vmatprep.subr.bf16.mxu0 0
    %1969 = vmatpush1.bf16.msra.mxu0 %v1812
    %1970 = vmatprep.subr.bf16.mxu0 0
    %1971 = vmatpush1.bf16.msra.mxu0 %v1813
    %1972 = vmatprep.subr.bf16.mxu0 0
    %1973 = vmatpush1.bf16.msra.mxu0 %v1814
    %1974 = vmatprep.subr.bf16.mxu0 0
    %1975 = vmatpush1.bf16.msra.mxu0 %v1815
    %1976 = vmatprep.mubr.bf16.mxu0 %v1346
    %1977 = vmatmul.mubr.bf16.gmra.mrb[0].mxu0 %v1345
    %v1978 = vpop.f32.mrb[0].mxu0
    %v1979 = vadd.f32 %v1511, %v1978
    %v1980 = vpop.f32.mrb[0].mxu0
    %v1981 = vpop.f32.mrb[0].mxu0
    %v1982 = vadd.f32 %v1511, %v1981
    %v1983 = vpop.f32.mrb[0].mxu0
    %1984 = vmatprep.mubr.bf16.mxu0 %v1355
    %1985 = vmatmul.mubr.bf16.gmra.mrb[0].mxu0 %v1354
    %v1986 = vpop.f32.mrb[0].mxu0
    %v1987 = vadd.f32 %v1511, %v1986
    %v1988 = vpop.f32.mrb[0].mxu0
    %v1989 = vpop.f32.mrb[0].mxu0
    %v1990 = vadd.f32 %v1511, %v1989
    %v1991 = vpop.f32.mrb[0].mxu0
    %1992 = vdwg.mxu0
    %1993 = vmatprep.subr.bf16.mxu0 0
    %1994 = vmatpush1.bf16.msra.mxu0 %v1816
    %1995 = vmatprep.subr.bf16.mxu0 0
    %1996 = vmatpush1.bf16.msra.mxu0 %v1817
    %1997 = vmatprep.subr.bf16.mxu0 0
    %1998 = vmatpush1.bf16.msra.mxu0 %v1818
    %1999 = vmatprep.subr.bf16.mxu0 0
    %2000 = vmatpush1.bf16.msra.mxu0 %v1819
    %2001 = vmatprep.subr.bf16.mxu0 0
    %2002 = vmatpush1.bf16.msra.mxu0 %v1820
    %2003 = vmatprep.subr.bf16.mxu0 0
    %2004 = vmatpush1.bf16.msra.mxu0 %v1821
    %2005 = vmatprep.subr.bf16.mxu0 0
    %2006 = vmatpush1.bf16.msra.mxu0 %v1822
    %2007 = vmatprep.subr.bf16.mxu0 0
    %2008 = vmatpush1.bf16.msra.mxu0 %v1823
    %2009 = vmatprep.subr.bf16.mxu0 0
    %2010 = vmatpush1.bf16.msra.mxu0 %v1824
    %2011 = vmatprep.subr.bf16.mxu0 0
    %2012 = vmatpush1.bf16.msra.mxu0 %v1825
    %2013 = vmatprep.subr.bf16.mxu0 0
    %2014 = vmatpush1.bf16.msra.mxu0 %v1826
    %2015 = vmatprep.subr.bf16.mxu0 0
    %2016 = vmatpush1.bf16.msra.mxu0 %v1827
    %2017 = vmatprep.subr.bf16.mxu0 0
    %2018 = vmatpush1.bf16.msra.mxu0 %v1828
    %2019 = vmatprep.subr.bf16.mxu0 0
    %2020 = vmatpush1.bf16.msra.mxu0 %v1829
    %2021 = vmatprep.subr.bf16.mxu0 0
    %2022 = vmatpush1.bf16.msra.mxu0 %v1830
    %2023 = vmatprep.subr.bf16.mxu0 0
    %2024 = vmatpush1.bf16.msra.mxu0 %v1831
    %2025 = vmatprep.mubr.bf16.mxu0 %v1348
    %2026 = vmatmul.mubr.bf16.gmra.mrb[0].mxu0 %v1347
    %v2027 = vpop.f32.mrb[0].mxu0
    %v2028 = vadd.f32 %v1979, %v2027
    %v2029 = vpop.f32.mrb[0].mxu0
    %v2030 = vpop.f32.mrb[0].mxu0
    %v2031 = vadd.f32 %v1982, %v2030
    %v2032 = vpop.f32.mrb[0].mxu0
    %2033 = vmatprep.mubr.bf16.mxu0 %v1357
    %2034 = vmatmul.mubr.bf16.gmra.mrb[0].mxu0 %v1356
    %v2035 = vpop.f32.mrb[0].mxu0
    %v2036 = vadd.f32 %v1987, %v2035
    %v2037 = vpop.f32.mrb[0].mxu0
    %v2038 = vpop.f32.mrb[0].mxu0
    %v2039 = vadd.f32 %v1990, %v2038
    %v2040 = vpop.f32.mrb[0].mxu0
    %2041 = vdwg.mxu0
    %2042 = vmatprep.subr.bf16.mxu0 0
    %2043 = vmatpush1.bf16.msra.mxu0 %v1832
    %2044 = vmatprep.subr.bf16.mxu0 0
    %2045 = vmatpush1.bf16.msra.mxu0 %v1833
    %2046 = vmatprep.subr.bf16.mxu0 0
    %2047 = vmatpush1.bf16.msra.mxu0 %v1834
    %2048 = vmatprep.subr.bf16.mxu0 0
    %2049 = vmatpush1.bf16.msra.mxu0 %v1835
    %2050 = vmatprep.subr.bf16.mxu0 0
    %2051 = vmatpush1.bf16.msra.mxu0 %v1836
    %2052 = vmatprep.subr.bf16.mxu0 0
    %2053 = vmatpush1.bf16.msra.mxu0 %v1837
    %2054 = vmatprep.subr.bf16.mxu0 0
    %2055 = vmatpush1.bf16.msra.mxu0 %v1838
    %2056 = vmatprep.subr.bf16.mxu0 0
    %2057 = vmatpush1.bf16.msra.mxu0 %v1839
    %2058 = vmatprep.subr.bf16.mxu0 0
    %2059 = vmatpush1.bf16.msra.mxu0 %v1840
    %2060 = vmatprep.subr.bf16.mxu0 0
    %2061 = vmatpush1.bf16.msra.mxu0 %v1841
    %2062 = vmatprep.subr.bf16.mxu0 0
    %2063 = vmatpush1.bf16.msra.mxu0 %v1842
    %2064 = vmatprep.subr.bf16.mxu0 0
    %2065 = vmatpush1.bf16.msra.mxu0 %v1843
    %2066 = vmatprep.subr.bf16.mxu0 0
    %2067 = vmatpush1.bf16.msra.mxu0 %v1844
    %2068 = vmatprep.subr.bf16.mxu0 0
    %2069 = vmatpush1.bf16.msra.mxu0 %v1845
    %2070 = vmatprep.subr.bf16.mxu0 0
    %2071 = vmatpush1.bf16.msra.mxu0 %v1846
    %2072 = vmatprep.subr.bf16.mxu0 0
    %2073 = vmatpush1.bf16.msra.mxu0 %v1847
    %2074 = vmatprep.mubr.bf16.mxu0 %v1350
    %2075 = vmatmul.mubr.bf16.gmra.mrb[0].mxu0 %v1349
    %v2076 = vpop.f32.mrb[0].mxu0
    %v2077 = vadd.f32 %v2028, %v2076
    %v2078 = vpop.f32.mrb[0].mxu0
    %v2079 = vpop.f32.mrb[0].mxu0
    %v2080 = vadd.f32 %v2031, %v2079
    %v2081 = vpop.f32.mrb[0].mxu0
    %2082 = vmatprep.mubr.bf16.mxu0 %v1359
    %2083 = vmatmul.mubr.bf16.gmra.mrb[0].mxu0 %v1358
    %v2084 = vpop.f32.mrb[0].mxu0
    %v2085 = vadd.f32 %v2036, %v2084
    %v2086 = vpop.f32.mrb[0].mxu0
    %v2087 = vpop.f32.mrb[0].mxu0
    %v2088 = vadd.f32 %v2039, %v2087
    %v2089 = vpop.f32.mrb[0].mxu0
    %2090 = vdwg.mxu0
    %2091 = vmatprep.subr.bf16.mxu0 0
    %2092 = vmatpush1.bf16.msra.mxu0 %v1848
    %2093 = vmatprep.subr.bf16.mxu0 0
    %2094 = vmatpush1.bf16.msra.mxu0 %v1849
    %2095 = vmatprep.subr.bf16.mxu0 0
    %2096 = vmatpush1.bf16.msra.mxu0 %v1850
    %2097 = vmatprep.subr.bf16.mxu0 0
    %2098 = vmatpush1.bf16.msra.mxu0 %v1851
    %2099 = vmatprep.subr.bf16.mxu0 0
    %2100 = vmatpush1.bf16.msra.mxu0 %v1852
    %2101 = vmatprep.subr.bf16.mxu0 0
    %2102 = vmatpush1.bf16.msra.mxu0 %v1853
    %2103 = vmatprep.subr.bf16.mxu0 0
    %2104 = vmatpush1.bf16.msra.mxu0 %v1854
    %2105 = vmatprep.subr.bf16.mxu0 0
    %2106 = vmatpush1.bf16.msra.mxu0 %v1855
    %2107 = vmatprep.subr.bf16.mxu0 0
    %2108 = vmatpush1.bf16.msra.mxu0 %v1856
    %2109 = vmatprep.subr.bf16.mxu0 0
    %2110 = vmatpush1.bf16.msra.mxu0 %v1857
    %2111 = vmatprep.subr.bf16.mxu0 0
    %2112 = vmatpush1.bf16.msra.mxu0 %v1858
    %2113 = vmatprep.subr.bf16.mxu0 0
    %2114 = vmatpush1.bf16.msra.mxu0 %v1859
    %2115 = vmatprep.subr.bf16.mxu0 0
    %2116 = vmatpush1.bf16.msra.mxu0 %v1860
    %2117 = vmatprep.subr.bf16.mxu0 0
    %2118 = vmatpush1.bf16.msra.mxu0 %v1861
    %2119 = vmatprep.subr.bf16.mxu0 0
    %2120 = vmatpush1.bf16.msra.mxu0 %v1862
    %2121 = vmatprep.subr.bf16.mxu0 0
    %2122 = vmatpush1.bf16.msra.mxu0 %v1863
    %2123 = vmatprep.mubr.bf16.mxu0 %v1352
    %2124 = vmatmul.mubr.bf16.gmra.mrb[0].mxu0 %v1351
    %v2125 = vpop.f32.mrb[0].mxu0
    %v2126 = vadd.f32 %v2077, %v2125
    %v2127 = vpop.f32.mrb[0].mxu0
    %v2128 = vpop.f32.mrb[0].mxu0
    %v2129 = vadd.f32 %v2080, %v2128
    %v2130 = vpop.f32.mrb[0].mxu0
    %2131 = vmatprep.mubr.bf16.mxu0 %v1361
    %2132 = vmatmul.mubr.bf16.gmra.mrb[0].mxu0 %v1360
    %v2133 = vpop.f32.mrb[0].mxu0
    %v2134 = vadd.f32 %v2085, %v2133
    %v2135 = vpop.f32.mrb[0].mxu0
    %v2136 = vpop.f32.mrb[0].mxu0
    %v2137 = vadd.f32 %v2088, %v2136
    %v2138 = vpop.f32.mrb[0].mxu0
    %2139 = vdwg.mxu0
    %2140 = vmatprep.subr.bf16.mxu0 0
    %2141 = vmatpush1.bf16.msra.mxu0 %v1864
    %2142 = vmatprep.subr.bf16.mxu0 0
    %2143 = vmatpush1.bf16.msra.mxu0 %v1865
    %2144 = vmatprep.subr.bf16.mxu0 0
    %2145 = vmatpush1.bf16.msra.mxu0 %v1866
    %2146 = vmatprep.subr.bf16.mxu0 0
    %2147 = vmatpush1.bf16.msra.mxu0 %v1867
    %2148 = vmatprep.subr.bf16.mxu0 0
    %2149 = vmatpush1.bf16.msra.mxu0 %v1868
    %2150 = vmatprep.subr.bf16.mxu0 0
    %2151 = vmatpush1.bf16.msra.mxu0 %v1869
    %2152 = vmatprep.subr.bf16.mxu0 0
    %2153 = vmatpush1.bf16.msra.mxu0 %v1870
    %2154 = vmatprep.subr.bf16.mxu0 0
    %2155 = vmatpush1.bf16.msra.mxu0 %v1871
    %2156 = vmatprep.subr.bf16.mxu0 0
    %2157 = vmatpush1.bf16.msra.mxu0 0
    %2158 = vmatprep.subr.bf16.mxu0 0
    %2159 = vmatpush1.bf16.msra.mxu0 0
    %2160 = vmatprep.subr.bf16.mxu0 0
    %2161 = vmatpush1.bf16.msra.mxu0 0
    %2162 = vmatprep.subr.bf16.mxu0 0
    %2163 = vmatpush1.bf16.msra.mxu0 0
    %2164 = vmatprep.subr.bf16.mxu0 0
    %2165 = vmatpush1.bf16.msra.mxu0 0
    %2166 = vmatprep.subr.bf16.mxu0 0
    %2167 = vmatpush1.bf16.msra.mxu0 0
    %2168 = vmatprep.subr.bf16.mxu0 0
    %2169 = vmatpush1.bf16.msra.mxu0 0
    %2170 = vmatprep.subr.bf16.mxu0 0
    %2171 = vmatpush1.bf16.msra.mxu0 0
    %2172 = vmatprep.mubr.bf16.mxu0 0
    %2173 = vmatmul.mubr.bf16.gmra.mrb[0].mxu0 %v1353
    %v2174 = vpop.f32.mrb[0].mxu0
    %v2175 = vadd.f32 %v2126, %v2174
    %v2176 = vpop.f32.mrb[0].mxu0
    %v2177 = vpop.f32.mrb[0].mxu0
    %v2178 = vadd.f32 %v2129, %v2177
    %v2179 = vpop.f32.mrb[0].mxu0
    %2180 = vmatprep.mubr.bf16.mxu0 0
    %2181 = vmatmul.mubr.bf16.gmra.mrb[0].mxu0 %v1362
    %v2182 = vpop.f32.mrb[0].mxu0
    %v2183 = vadd.f32 %v2134, %v2182
    %v2184 = vpop.f32.mrb[0].mxu0
    %v2185 = vpop.f32.mrb[0].mxu0
    %v2186 = vadd.f32 %v2137, %v2185
    %v2187 = vpop.f32.mrb[0].mxu0
    %2188 = vdwg.mxu0
    %v2189 = vadd.f32 %v2175, %v60
    %v2190 = vadd.f32 %v2178, %v61
    %v2191 = vadd.f32 %v2183, %v62
    %v2192 = vadd.f32 %v2186, %v63
    %v2193 = vmax.f32 %v2189, 0.0
    %v2194 = vmax.f32 %v2190, 0.0
    %v2195 = vmax.f32 %v2191, 0.0
    %v2196 = vmax.f32 %v2192, 0.0
    %2197 = vst [vmem:[#allocation9] sm:$0xff] %v2193
    %2198 = vst [vmem:[#allocation9 + $0x8] sm:$0xff] %v2194
    %2199 = vst [vmem:[#allocation9 + $0x10] sm:$0xff] %v2195
    %2200 = vst [vmem:[#allocation9 + $0x18] sm:$0xff] %v2196
    // Predicated region
    $region30: #{tpu_custom_call.1} parent=1 // pred_check
      _
    $region31: #{tpu_custom_call.1} parent=1 // pred_check_branch
      %2202 = sbr.rel (0) target = $region33
    $region32: #{tpu_custom_call.1} parent=1 // pred_region
      %s2204 = ssub.s32 512, 512
      %2205 = vsyncadd [#allocation5], %s2204
      %s2206 = sshll.u32 [#allocation9], 4
      %s2207 = int_to_ptr.vmem [resolvable:$true] %s2206
      %2212 = dma.vmem_to_hbm [thread:$0]  %s2207, 512, %s4, [#allocation5], 128, 128, 8
    $region33: #{tpu_custom_call.1} parent=1 // pred_fallthru
      _
    // Predicated region
    $region34: #{tpu_custom_call.1} parent=1 // pred_check
      _
    $region35: #{tpu_custom_call.1} parent=1 // pred_check_branch
      %2214 = sbr.rel (0) target = $region37
    $region36: #{tpu_custom_call.1} parent=1 // pred_region
      %2215 = dma.done [#allocation5], 512
    $region37: #{tpu_custom_call.1} parent=1 // pred_fallthru
      _
    %2216 = vsyncpa [#allocation4], 1
    %2217 = vsyncpa [#allocation7], 1
    %2218 = vsyncpa [#allocation5], 1

</llo_original>
